<compile_context>
chip_gen: v6e
topology: v6e:2x2x1
jax: 0.10.0
libtpu: 0.0.40
codegen_flags: <defaults>
</compile_context>

<pallas_src>
import functools

import jax
import jax.numpy as jnp
from jax.experimental import pallas as pl
from jax.experimental.pallas import tpu as pltpu

_LANE = 128
_F32_SUBLANE = 8      # f32 rows per vreg
_BF16_SUBLANE = 16    # bf16 rows per vreg


def _round_up(x, m):
    return (x + m - 1) // m * m


def _cdiv(a, b):
    return -(-a // b)


def _sigmoid_eup(z):
    # sigmoid(z) == 0.5 * (tanh(z/2) + 1): one EUP transcendental, no VPU divide.
    # Python-float constants are weak-typed, so this stays in z.dtype (f32/bf16).
    return 0.5 * (jnp.tanh(0.5 * z) + 1.0)


def nnh5_sigm_kernel(x_ref,
                     w1_ref, w2_ref, w3_ref, w4_ref, w5_ref, w6_ref,
                     b_ref, out_ref, *, widths, bf16_act):
    """x_ref: (tile_m, 128) bf16; w*_ref: lane-padded (in, out) bf16;
    b_ref: (8, 512) f32 packed biases (row i = bias of layer i)."""
    h = x_ref[...]                                    # bf16 MXU operand
    w_refs = (w1_ref, w2_ref, w3_ref, w4_ref, w5_ref, w6_ref)
    n_layers = len(w_refs)
    for i, w_ref in enumerate(w_refs):
        z = jnp.dot(h, w_ref[...], preferred_element_type=jnp.float32)
        # (1, w) bias slice -> cheap broadcast add (no sublane-select row extract).
        z = z + b_ref[pl.ds(i, 1), :widths[i]]
        if i + 1 < n_layers:
            if bf16_act:
                # v6e/v7x: bf16 EUP/VPU path; result feeds next matmul as bf16.
                h = _sigmoid_eup(z.astype(jnp.bfloat16))
            else:
                # v5e: no bf16 VPU/EUP -> keep activation math in f32.
                h = _sigmoid_eup(z).astype(jnp.bfloat16)
        else:
            out_ref[...] = _sigmoid_eup(z).astype(out_ref.dtype)


def pad_params(params):
    """params: list of (W (in,out) f32, b (1,out) f32).

    Returns lane-padded bf16 weights, one packed (8, max_width) f32 bias
    buffer, the original dims and the padded dims.  Padded weight rows/cols
    are zero, so the sigmoid(0)=0.5 values in padded activation columns never
    reach real outputs.
    """
    dims = [params[0][0].shape[0]] + [w.shape[1] for w, _ in params]
    pdims = [_round_up(d, _LANE) for d in dims]
    max_w = max(pdims[1:])
    ws = []
    bias_buf = jnp.zeros((_F32_SUBLANE, max_w), jnp.float32)
    for i, (w, b) in enumerate(params):
        wp = jnp.zeros((pdims[i], pdims[i + 1]), jnp.float32)
        wp = wp.at[: w.shape[0], : w.shape[1]].set(w)
        ws.append(wp.astype(jnp.bfloat16))
        bias_buf = bias_buf.at[i, : b.shape[1]].set(b[0])
    return ws, bias_buf, dims, pdims


def _device_kind():
    try:
        return jax.devices()[0].device_kind.lower()
    except Exception:
        return ""


def _choose_tile_m(batch_r16, tile_cap, prefer_two_tiles):
    """Pick a 16-row-aligned batch tile.

    Large tiles amortize the ~0.35 us per-grid-step overhead and the serial
    6-matmul chain; on v7x we also want an even number of tiles so both
    TensorCores get work."""
    if batch_r16 <= tile_cap and not (prefer_two_tiles and batch_r16 > 512):
        return batch_r16
    n_tiles = max(2 if prefer_two_tiles else 1, _cdiv(batch_r16, tile_cap))
    if n_tiles > 1 and n_tiles % 2:
        n_tiles += 1
    return _round_up(_cdiv(batch_r16, n_tiles), _BF16_SUBLANE)


def nnh5_sigm_forward(x, params, *, tile_cap=1024):
    """x: (batch, input_size) f32. params: list of (W (in,out), b (1,out)) f32."""
    ws, bias_buf, dims, pdims = pad_params(params)
    batch, in_features = x.shape
    num_classes = dims[-1]
    widths = tuple(pdims[1:])

    kind = _device_kind()
    bf16_act = ("v6" in kind) or ("v7" in kind)   # v5e keeps f32 activation math
    prefer_two_tiles = "v7" in kind               # 2 TensorCores per chip

    # 16-row alignment (bf16 sublane packing) for tile_m and padded batch.
    batch_r = _round_up(batch, _BF16_SUBLANE)
    tile_m = _choose_tile_m(batch_r, tile_cap, prefer_two_tiles)
    pbatch = _round_up(batch_r, tile_m)
    grid = (pbatch // tile_m,)

    xp = jnp.zeros((pbatch, pdims[0]), jnp.float32)
    xp = xp.at[:batch, :in_features].set(x).astype(jnp.bfloat16)

    flops = 2 * pbatch * sum(pdims[i] * pdims[i + 1] for i in range(len(ws)))
    transcendentals = pbatch * sum(widths)
    bytes_accessed = (xp.size * 2 + sum(w.size * 2 for w in ws)
                      + bias_buf.size * 4 + pbatch * widths[-1] * 4)

    def resident_spec(arr):
        # Constant index_map: block stays VMEM-resident across the batch grid.
        return pl.BlockSpec(arr.shape, lambda i: (0,) * arr.ndim)

    out_padded = pl.pallas_call(
        functools.partial(nnh5_sigm_kernel, widths=widths, bf16_act=bf16_act),
        out_shape=jax.ShapeDtypeStruct((pbatch, widths[-1]), jnp.float32),
        grid=grid,
        in_specs=[pl.BlockSpec((tile_m, pdims[0]), lambda i: (i, 0))]
                 + [resident_spec(w) for w in ws]
                 + [resident_spec(bias_buf)],
        out_specs=pl.BlockSpec((tile_m, widths[-1]), lambda i: (i, 0)),
        compiler_params=pltpu.CompilerParams(
            dimension_semantics=("parallel",)),
        cost_estimate=pl.CostEstimate(
            flops=flops,
            transcendentals=transcendentals,
            bytes_accessed=bytes_accessed),
    )(xp, *ws, bias_buf)

    # Strip batch/class padding outside the kernel (kernel store stays lane-dense).
    return out_padded[:batch, :num_classes]


def init_params(key, input_size, num_classes):
    """PyTorch nn.Linear-style init: U[-1/sqrt(fan_in), 1/sqrt(fan_in)]."""
    sizes = [input_size, 500, 300, 100, 50, 30, num_classes]
    params = []
    for i in range(len(sizes) - 1):
        fan_in, fan_out = sizes[i], sizes[i + 1]
        key, kw, kb = jax.random.split(key, 3)
        bound = 1.0 / jnp.sqrt(jnp.float32(fan_in))
        w = jax.random.uniform(kw, (fan_in, fan_out), jnp.float32, -bound, bound)
        b = jax.random.uniform(kb, (1, fan_out), jnp.float32, -bound, bound)
        params.append((w, b))
    return params


def reference_forward_f32(x, params):
    h = x
    for w, b in params:
        h = jax.nn.sigmoid(h @ w + b)
    return h


def reference_forward_kernel_math(x, params, bf16_act):
    """Mirrors kernel numerics: bf16 matmul operands, f32 accumulate,
    tanh-form sigmoid (bf16 on intermediate layers iff bf16_act)."""
    h = x.astype(jnp.bfloat16)
    n = len(params)
    for i, (w, b) in enumerate(params):
        z = jnp.dot(h, w.astype(jnp.bfloat16),
                    preferred_element_type=jnp.float32) + b
        if i + 1 < n:
            if bf16_act:
                h = _sigmoid_eup(z.astype(jnp.bfloat16))
            else:
                h = _sigmoid_eup(z).astype(jnp.bfloat16)
        else:
            return _sigmoid_eup(z)


if __name__ == "__main__":
    key = jax.random.PRNGKey(0)
    batch, input_size, num_classes = 8, 64, 10

    kx, kp, kx2 = jax.random.split(key, 3)
    x = jax.random.normal(kx, (batch, input_size), jnp.float32)
    params = init_params(kp, input_size, num_classes)

    bf16_act = ("v6" in _device_kind()) or ("v7" in _device_kind())

    out = jax.block_until_ready(nnh5_sigm_forward(x, params))
    assert out.shape == (batch, num_classes)

    ref_bits = reference_forward_kernel_math(x, params, bf16_act)
    ref_f32 = reference_forward_f32(x, params)
    assert jnp.allclose(out, ref_bits, atol=1e-2, rtol=1e-2), \
        "mismatch vs matched-precision reference"
    assert jnp.allclose(out, ref_f32, atol=5e-2), \
        "mismatch vs f32 reference"

    # Small multi-tile check (grid > 1): exercises batch padding + tile seams.
    batch2 = 72
    x2 = jax.random.normal(kx2, (batch2, input_size), jnp.float32)
    out2 = jax.block_until_ready(nnh5_sigm_forward(x2, params, tile_cap=32))
    assert out2.shape == (batch2, num_classes)
    assert jnp.allclose(out2, reference_forward_f32(x2, params), atol=5e-2), \
        "multi-tile mismatch vs f32 reference"

    print("KERNEL_OK")
</pallas_src>

<mosaic_0001>
module attributes {stable_mosaic.version = 11 : i64} {
  func.func @nnh5_sigm_kernel(%arg0: i32, %arg1: memref<16x128xbf16, #tpu.memory_space<vmem>>, %arg2: memref<128x512xbf16, #tpu.memory_space<vmem>>, %arg3: memref<512x384xbf16, #tpu.memory_space<vmem>>, %arg4: memref<384x128xbf16, #tpu.memory_space<vmem>>, %arg5: memref<128x128xbf16, #tpu.memory_space<vmem>>, %arg6: memref<128x128xbf16, #tpu.memory_space<vmem>>, %arg7: memref<128x128xbf16, #tpu.memory_space<vmem>>, %arg8: memref<8x512xf32, #tpu.memory_space<vmem>>, %arg9: memref<16x128xf32, #tpu.memory_space<vmem>>) attributes {dimension_semantics = [#tpu.dimension_semantics<parallel>], iteration_bounds = array<i64: 1>, scalar_prefetch = 0 : i64, scratch_operands = 0 : i64, tpu.core_type = #tpu.core_type<tc>, window_params = [{transform_indices = @transform_0, window_bounds = array<i64: 16, 128>}, {pipeline_mode = #tpu.pipeline_mode<synchronous>, transform_indices = @transform_1, window_bounds = array<i64: 128, 512>}, {pipeline_mode = #tpu.pipeline_mode<synchronous>, transform_indices = @transform_2, window_bounds = array<i64: 512, 384>}, {pipeline_mode = #tpu.pipeline_mode<synchronous>, transform_indices = @transform_3, window_bounds = array<i64: 384, 128>}, {pipeline_mode = #tpu.pipeline_mode<synchronous>, transform_indices = @transform_4, window_bounds = array<i64: 128, 128>}, {pipeline_mode = #tpu.pipeline_mode<synchronous>, transform_indices = @transform_5, window_bounds = array<i64: 128, 128>}, {pipeline_mode = #tpu.pipeline_mode<synchronous>, transform_indices = @transform_6, window_bounds = array<i64: 128, 128>}, {pipeline_mode = #tpu.pipeline_mode<synchronous>, transform_indices = @transform_7, window_bounds = array<i64: 8, 512>}, {transform_indices = @transform_8, window_bounds = array<i64: 16, 128>}]} {
    %c0 = arith.constant 0 : index
    %c0_0 = arith.constant 0 : index
    %0 = vector.load %arg1[%c0, %c0_0] : memref<16x128xbf16, #tpu.memory_space<vmem>>, vector<16x128xbf16>
    %c0_1 = arith.constant 0 : index
    %c0_2 = arith.constant 0 : index
    %1 = vector.load %arg2[%c0_1, %c0_2] : memref<128x512xbf16, #tpu.memory_space<vmem>>, vector<128x512xbf16>
    %cst = arith.constant dense<0.000000e+00> : vector<16x512xf32>
    %2 = tpu.matmul %0, %1, %cst {dimension_numbers = #tpu.dot_dimension_numbers<[1], [0], [0], [1], [0, 0, 1, 1], [], []>} : vector<16x128xbf16>, vector<128x512xbf16>, vector<16x512xf32> -> vector<16x512xf32>
    %c0_3 = arith.constant 0 : index
    %c0_4 = arith.constant 0 : index
    %3 = vector.load %arg8[%c0_3, %c0_4] : memref<8x512xf32, #tpu.memory_space<vmem>>, vector<1x512xf32>
    %4 = vector.broadcast %3 : vector<1x512xf32> to vector<16x512xf32>
    %5 = arith.addf %2, %4 : vector<16x512xf32>
    %cst_5 = arith.constant 5.000000e-01 : f32
    %6 = vector.broadcast %cst_5 : f32 to vector<16x512xf32>
    %7 = arith.mulf %6, %5 : vector<16x512xf32>
    %8 = math.tanh %7 : vector<16x512xf32>
    %cst_6 = arith.constant 1.000000e+00 : f32
    %9 = vector.broadcast %cst_6 : f32 to vector<16x512xf32>
    %10 = arith.addf %8, %9 : vector<16x512xf32>
    %cst_7 = arith.constant 5.000000e-01 : f32
    %11 = vector.broadcast %cst_7 : f32 to vector<16x512xf32>
    %12 = arith.mulf %11, %10 : vector<16x512xf32>
    %13 = arith.truncf %12 : vector<16x512xf32> to vector<16x512xbf16>
    %c0_8 = arith.constant 0 : index
    %c0_9 = arith.constant 0 : index
    %14 = vector.load %arg3[%c0_8, %c0_9] : memref<512x384xbf16, #tpu.memory_space<vmem>>, vector<512x384xbf16>
    %cst_10 = arith.constant dense<0.000000e+00> : vector<16x384xf32>
    %15 = tpu.matmul %13, %14, %cst_10 {dimension_numbers = #tpu.dot_dimension_numbers<[1], [0], [0], [1], [0, 0, 1, 1], [], []>} : vector<16x512xbf16>, vector<512x384xbf16>, vector<16x384xf32> -> vector<16x384xf32>
    %c1 = arith.constant 1 : index
    %c0_11 = arith.constant 0 : index
    %16 = vector.load %arg8[%c1, %c0_11] : memref<8x512xf32, #tpu.memory_space<vmem>>, vector<1x384xf32>
    %17 = vector.broadcast %16 : vector<1x384xf32> to vector<16x384xf32>
    %18 = arith.addf %15, %17 : vector<16x384xf32>
    %cst_12 = arith.constant 5.000000e-01 : f32
    %19 = vector.broadcast %cst_12 : f32 to vector<16x384xf32>
    %20 = arith.mulf %19, %18 : vector<16x384xf32>
    %21 = math.tanh %20 : vector<16x384xf32>
    %cst_13 = arith.constant 1.000000e+00 : f32
    %22 = vector.broadcast %cst_13 : f32 to vector<16x384xf32>
    %23 = arith.addf %21, %22 : vector<16x384xf32>
    %cst_14 = arith.constant 5.000000e-01 : f32
    %24 = vector.broadcast %cst_14 : f32 to vector<16x384xf32>
    %25 = arith.mulf %24, %23 : vector<16x384xf32>
    %26 = arith.truncf %25 : vector<16x384xf32> to vector<16x384xbf16>
    %c0_15 = arith.constant 0 : index
    %c0_16 = arith.constant 0 : index
    %27 = vector.load %arg4[%c0_15, %c0_16] : memref<384x128xbf16, #tpu.memory_space<vmem>>, vector<384x128xbf16>
    %cst_17 = arith.constant dense<0.000000e+00> : vector<16x128xf32>
    %28 = tpu.matmul %26, %27, %cst_17 {dimension_numbers = #tpu.dot_dimension_numbers<[1], [0], [0], [1], [0, 0, 1, 1], [], []>} : vector<16x384xbf16>, vector<384x128xbf16>, vector<16x128xf32> -> vector<16x128xf32>
    %c2 = arith.constant 2 : index
    %c0_18 = arith.constant 0 : index
    %29 = vector.load %arg8[%c2, %c0_18] : memref<8x512xf32, #tpu.memory_space<vmem>>, vector<1x128xf32>
    %30 = vector.broadcast %29 : vector<1x128xf32> to vector<16x128xf32>
    %31 = arith.addf %28, %30 : vector<16x128xf32>
    %cst_19 = arith.constant 5.000000e-01 : f32
    %32 = vector.broadcast %cst_19 : f32 to vector<16x128xf32>
    %33 = arith.mulf %32, %31 : vector<16x128xf32>
    %34 = math.tanh %33 : vector<16x128xf32>
    %cst_20 = arith.constant 1.000000e+00 : f32
    %35 = vector.broadcast %cst_20 : f32 to vector<16x128xf32>
    %36 = arith.addf %34, %35 : vector<16x128xf32>
    %cst_21 = arith.constant 5.000000e-01 : f32
    %37 = vector.broadcast %cst_21 : f32 to vector<16x128xf32>
    %38 = arith.mulf %37, %36 : vector<16x128xf32>
    %39 = arith.truncf %38 : vector<16x128xf32> to vector<16x128xbf16>
    %c0_22 = arith.constant 0 : index
    %c0_23 = arith.constant 0 : index
    %40 = vector.load %arg5[%c0_22, %c0_23] : memref<128x128xbf16, #tpu.memory_space<vmem>>, vector<128x128xbf16>
    %cst_24 = arith.constant dense<0.000000e+00> : vector<16x128xf32>
    %41 = tpu.matmul %39, %40, %cst_24 {dimension_numbers = #tpu.dot_dimension_numbers<[1], [0], [0], [1], [0, 0, 1, 1], [], []>} : vector<16x128xbf16>, vector<128x128xbf16>, vector<16x128xf32> -> vector<16x128xf32>
    %c3 = arith.constant 3 : index
    %c0_25 = arith.constant 0 : index
    %42 = vector.load %arg8[%c3, %c0_25] : memref<8x512xf32, #tpu.memory_space<vmem>>, vector<1x128xf32>
    %43 = vector.broadcast %42 : vector<1x128xf32> to vector<16x128xf32>
    %44 = arith.addf %41, %43 : vector<16x128xf32>
    %cst_26 = arith.constant 5.000000e-01 : f32
    %45 = vector.broadcast %cst_26 : f32 to vector<16x128xf32>
    %46 = arith.mulf %45, %44 : vector<16x128xf32>
    %47 = math.tanh %46 : vector<16x128xf32>
    %cst_27 = arith.constant 1.000000e+00 : f32
    %48 = vector.broadcast %cst_27 : f32 to vector<16x128xf32>
    %49 = arith.addf %47, %48 : vector<16x128xf32>
    %cst_28 = arith.constant 5.000000e-01 : f32
    %50 = vector.broadcast %cst_28 : f32 to vector<16x128xf32>
    %51 = arith.mulf %50, %49 : vector<16x128xf32>
    %52 = arith.truncf %51 : vector<16x128xf32> to vector<16x128xbf16>
    %c0_29 = arith.constant 0 : index
    %c0_30 = arith.constant 0 : index
    %53 = vector.load %arg6[%c0_29, %c0_30] : memref<128x128xbf16, #tpu.memory_space<vmem>>, vector<128x128xbf16>
    %cst_31 = arith.constant dense<0.000000e+00> : vector<16x128xf32>
    %54 = tpu.matmul %52, %53, %cst_31 {dimension_numbers = #tpu.dot_dimension_numbers<[1], [0], [0], [1], [0, 0, 1, 1], [], []>} : vector<16x128xbf16>, vector<128x128xbf16>, vector<16x128xf32> -> vector<16x128xf32>
    %c4 = arith.constant 4 : index
    %c0_32 = arith.constant 0 : index
    %55 = vector.load %arg8[%c4, %c0_32] : memref<8x512xf32, #tpu.memory_space<vmem>>, vector<1x128xf32>
    %56 = vector.broadcast %55 : vector<1x128xf32> to vector<16x128xf32>
    %57 = arith.addf %54, %56 : vector<16x128xf32>
    %cst_33 = arith.constant 5.000000e-01 : f32
    %58 = vector.broadcast %cst_33 : f32 to vector<16x128xf32>
    %59 = arith.mulf %58, %57 : vector<16x128xf32>
    %60 = math.tanh %59 : vector<16x128xf32>
    %cst_34 = arith.constant 1.000000e+00 : f32
    %61 = vector.broadcast %cst_34 : f32 to vector<16x128xf32>
    %62 = arith.addf %60, %61 : vector<16x128xf32>
    %cst_35 = arith.constant 5.000000e-01 : f32
    %63 = vector.broadcast %cst_35 : f32 to vector<16x128xf32>
    %64 = arith.mulf %63, %62 : vector<16x128xf32>
    %65 = arith.truncf %64 : vector<16x128xf32> to vector<16x128xbf16>
    %c0_36 = arith.constant 0 : index
    %c0_37 = arith.constant 0 : index
    %66 = vector.load %arg7[%c0_36, %c0_37] : memref<128x128xbf16, #tpu.memory_space<vmem>>, vector<128x128xbf16>
    %cst_38 = arith.constant dense<0.000000e+00> : vector<16x128xf32>
    %67 = tpu.matmul %65, %66, %cst_38 {dimension_numbers = #tpu.dot_dimension_numbers<[1], [0], [0], [1], [0, 0, 1, 1], [], []>} : vector<16x128xbf16>, vector<128x128xbf16>, vector<16x128xf32> -> vector<16x128xf32>
    %c5 = arith.constant 5 : index
    %c0_39 = arith.constant 0 : index
    %68 = vector.load %arg8[%c5, %c0_39] : memref<8x512xf32, #tpu.memory_space<vmem>>, vector<1x128xf32>
    %69 = vector.broadcast %68 : vector<1x128xf32> to vector<16x128xf32>
    %70 = arith.addf %67, %69 : vector<16x128xf32>
    %cst_40 = arith.constant 5.000000e-01 : f32
    %71 = vector.broadcast %cst_40 : f32 to vector<16x128xf32>
    %72 = arith.mulf %71, %70 : vector<16x128xf32>
    %73 = math.tanh %72 : vector<16x128xf32>
    %cst_41 = arith.constant 1.000000e+00 : f32
    %74 = vector.broadcast %cst_41 : f32 to vector<16x128xf32>
    %75 = arith.addf %73, %74 : vector<16x128xf32>
    %cst_42 = arith.constant 5.000000e-01 : f32
    %76 = vector.broadcast %cst_42 : f32 to vector<16x128xf32>
    %77 = arith.mulf %76, %75 : vector<16x128xf32>
    %c0_43 = arith.constant 0 : index
    %c0_44 = arith.constant 0 : index
    %78 = vector.load %arg9[%c0_43, %c0_44] : memref<16x128xf32, #tpu.memory_space<vmem>>, vector<16x128xf32>
    tpu.vector_store %arg9[%c0_43, %c0_44], %77 {strides = array<i32>} : memref<16x128xf32, #tpu.memory_space<vmem>>, vector<16x128xf32>,
    return
  }
  func.func @transform_0(%arg0: i32) -> (i32, i32) {
    %c0_i32 = arith.constant 0 : i32
    %c0_i32_0 = arith.constant 0 : i32
    return %arg0, %c0_i32 : i32, i32
  }
  func.func @transform_1(%arg0: i32) -> (i32, i32) {
    %c0_i32 = arith.constant 0 : i32
    %c0_i32_0 = arith.constant 0 : i32
    %c0_i32_1 = arith.constant 0 : i32
    return %c0_i32, %c0_i32_0 : i32, i32
  }
  func.func @transform_2(%arg0: i32) -> (i32, i32) {
    %c0_i32 = arith.constant 0 : i32
    %c0_i32_0 = arith.constant 0 : i32
    %c0_i32_1 = arith.constant 0 : i32
    return %c0_i32, %c0_i32_0 : i32, i32
  }
  func.func @transform_3(%arg0: i32) -> (i32, i32) {
    %c0_i32 = arith.constant 0 : i32
    %c0_i32_0 = arith.constant 0 : i32
    %c0_i32_1 = arith.constant 0 : i32
    return %c0_i32, %c0_i32_0 : i32, i32
  }
  func.func @transform_4(%arg0: i32) -> (i32, i32) {
    %c0_i32 = arith.constant 0 : i32
    %c0_i32_0 = arith.constant 0 : i32
    %c0_i32_1 = arith.constant 0 : i32
    return %c0_i32, %c0_i32_0 : i32, i32
  }
  func.func @transform_5(%arg0: i32) -> (i32, i32) {
    %c0_i32 = arith.constant 0 : i32
    %c0_i32_0 = arith.constant 0 : i32
    %c0_i32_1 = arith.constant 0 : i32
    return %c0_i32, %c0_i32_0 : i32, i32
  }
  func.func @transform_6(%arg0: i32) -> (i32, i32) {
    %c0_i32 = arith.constant 0 : i32
    %c0_i32_0 = arith.constant 0 : i32
    %c0_i32_1 = arith.constant 0 : i32
    return %c0_i32, %c0_i32_0 : i32, i32
  }
  func.func @transform_7(%arg0: i32) -> (i32, i32) {
    %c0_i32 = arith.constant 0 : i32
    %c0_i32_0 = arith.constant 0 : i32
    %c0_i32_1 = arith.constant 0 : i32
    return %c0_i32, %c0_i32_0 : i32, i32
  }
  func.func @transform_8(%arg0: i32) -> (i32, i32) {
    %c0_i32 = arith.constant 0 : i32
    %c0_i32_0 = arith.constant 0 : i32
    return %arg0, %c0_i32 : i32, i32
  }
}

</mosaic_0001>

<llo_original>
// kernel: tpu_custom_call.1
$region0: #{tpu_custom_call.1}
  #allocation0 [shape = 'u32[]', space=smem, size = 0x4, offset = 0x4, fixed_abs, tag = 'smem constant byte address 0x4 - core index']
  #allocation1 [shape = 'u32[144,128]{1,0:T(1,128)}', space=vmem, size = 0x12000, scoped, tag = 'internal scratch']
  %s0 = inlined_call_operand.hbm [shape: bf16[16,128], index: 0, kind: input, shape index: {}]
  %s1 = inlined_call_operand.hbm [shape: bf16[128,512], index: 1, kind: input, shape index: {}]
  %s2 = inlined_call_operand.hbm [shape: bf16[512,384], index: 2, kind: input, shape index: {}]
  %s3 = inlined_call_operand.hbm [shape: bf16[384,128], index: 3, kind: input, shape index: {}]
  %s4 = inlined_call_operand.hbm [shape: bf16[128,128], index: 4, kind: input, shape index: {}]
  %s5 = inlined_call_operand.hbm [shape: bf16[128,128], index: 5, kind: input, shape index: {}]
  %s6 = inlined_call_operand.hbm [shape: bf16[128,128], index: 6, kind: input, shape index: {}]
  %s7 = inlined_call_operand.hbm [shape: f32[8,512], index: 7, kind: input, shape index: {}]
  %s8 = inlined_call_operand.hbm [shape: f32[16,128], index: 8, kind: output, shape index: {}]
  %s9 = sld [smem:[#allocation0]]
  $region74: #{tpu_custom_call.1} parent=0
    _
  %s11 = ssub.s32 1, %s9
  %s12 = scalar_select 0, %s11, %s9
  $region1: #{tpu_custom_call.1} parent=0
    #allocation2 [shape = 'u8[4096]{0}', space=vmem, size = 0x1000, scoped, tag = 'input window, operand 0, single buffered']
    #allocation3 [shape = 's32[1]{0}', space=sflag, size = 0x4, scoped, tag = 'scoped memory for tpu_custom_call.1']
    #allocation4 [shape = 's32[1]{0}', space=sflag, size = 0x4, scoped, tag = 'scoped memory for tpu_custom_call.1']
    #allocation5 [shape = 'u8[131072]{0}', space=vmem, size = 0x20000, scoped, tag = 'input window, operand 1, single buffered']
    #allocation6 [shape = 's32[1]{0}', space=sflag, size = 0x4, scoped, tag = 'scoped memory for tpu_custom_call.1']
    #allocation7 [shape = 'u8[393216]{0}', space=vmem, size = 0x60000, scoped, tag = 'input window, operand 2, single buffered']
    #allocation8 [shape = 'u8[98304]{0}', space=vmem, size = 0x18000, scoped, tag = 'input window, operand 3, single buffered']
    #allocation9 [shape = 's32[1]{0}', space=sflag, size = 0x4, scoped, tag = 'scoped memory for tpu_custom_call.1']
    #allocation10 [shape = 'u8[32768]{0}', space=vmem, size = 0x8000, scoped, tag = 'input window, operand 4, single buffered']
    #allocation11 [shape = 'u8[32768]{0}', space=vmem, size = 0x8000, scoped, tag = 'input window, operand 5, single buffered']
    #allocation12 [shape = 's32[1]{0}', space=sflag, size = 0x4, scoped, tag = 'scoped memory for tpu_custom_call.1']
    #allocation13 [shape = 'u8[32768]{0}', space=vmem, size = 0x8000, scoped, tag = 'input window, operand 6, single buffered']
    #allocation14 [shape = 'u8[16384]{0}', space=vmem, size = 0x4000, scoped, tag = 'input window, operand 7, single buffered']
    #allocation15 [shape = 's32[1]{0}', space=sflag, size = 0x4, scoped, tag = 'scoped memory for tpu_custom_call.1']
    #allocation16 [shape = 'u8[8192]{0}', space=vmem, size = 0x2000, scoped, tag = 'output window, operand 0, single buffered']
    %13 = vsyncpa [#allocation3], 0
    %14 = vsyncpa [#allocation6], 0
    %15 = vsyncpa [#allocation9], 0
    %16 = vsyncpa [#allocation12], 0
    %17 = vsyncpa [#allocation15], 0
    %18 = vsyncpa [#allocation4], 0
    // Predicated region
    $region2: #{tpu_custom_call.1} parent=1 // pred_check
      _
    $region3: #{tpu_custom_call.1} parent=1 // pred_check_branch
      %20 = sbr.rel (0) target = $region5
    $region4: #{tpu_custom_call.1} parent=1 // pred_region
      %s22 = ssub.s32 128, 128
      %23 = vsyncadd [#allocation3], %s22
      %s24 = sshll.u32 [#allocation2], 4
      %s25 = int_to_ptr.vmem [resolvable:$true] %s24
      %30 = dma.hbm_to_vmem [thread:$0]  %s0, 128, %s25, [#allocation3], 64, 64, 4
    $region5: #{tpu_custom_call.1} parent=1 // pred_fallthru
      _
    // Predicated region
    $region6: #{tpu_custom_call.1} parent=1 // pred_check
      _
    $region7: #{tpu_custom_call.1} parent=1 // pred_check_branch
      %32 = sbr.rel (0) target = $region9
    $region8: #{tpu_custom_call.1} parent=1 // pred_region
      %s34 = ssub.s32 4096, 4096
      %35 = vsyncadd [#allocation6], %s34
      %s36 = sshll.u32 [#allocation5], 4
      %s37 = int_to_ptr.vmem [resolvable:$true] %s36
      %42 = dma.hbm_to_vmem [thread:$0]  %s1, 4096, %s37, [#allocation6], 256, 256, 16
    $region9: #{tpu_custom_call.1} parent=1 // pred_fallthru
      _
    // Predicated region
    $region10: #{tpu_custom_call.1} parent=1 // pred_check
      _
    $region11: #{tpu_custom_call.1} parent=1 // pred_check_branch
      %44 = sbr.rel (0) target = $region13
    $region12: #{tpu_custom_call.1} parent=1 // pred_region
      %s46 = ssub.s32 12288, 12288
      %47 = vsyncadd [#allocation6], %s46
      %s48 = sshll.u32 [#allocation7], 4
      %s49 = int_to_ptr.vmem [resolvable:$true] %s48
      %54 = dma.hbm_to_vmem [thread:$0]  %s2, 12288, %s49, [#allocation6], 192, 192, 12
    $region13: #{tpu_custom_call.1} parent=1 // pred_fallthru
      _
    // Predicated region
    $region14: #{tpu_custom_call.1} parent=1 // pred_check
      _
    $region15: #{tpu_custom_call.1} parent=1 // pred_check_branch
      %56 = sbr.rel (0) target = $region17
    $region16: #{tpu_custom_call.1} parent=1 // pred_region
      %s58 = ssub.s32 3072, 3072
      %59 = vsyncadd [#allocation9], %s58
      %s60 = sshll.u32 [#allocation8], 4
      %s61 = int_to_ptr.vmem [resolvable:$true] %s60
      %66 = dma.hbm_to_vmem [thread:$0]  %s3, 3072, %s61, [#allocation9], 64, 64, 4
    $region17: #{tpu_custom_call.1} parent=1 // pred_fallthru
      _
    // Predicated region
    $region18: #{tpu_custom_call.1} parent=1 // pred_check
      _
    $region19: #{tpu_custom_call.1} parent=1 // pred_check_branch
      %68 = sbr.rel (0) target = $region21
    $region20: #{tpu_custom_call.1} parent=1 // pred_region
      %s70 = ssub.s32 1024, 1024
      %71 = vsyncadd [#allocation9], %s70
      %s72 = sshll.u32 [#allocation10], 4
      %s73 = int_to_ptr.vmem [resolvable:$true] %s72
      %78 = dma.hbm_to_vmem [thread:$0]  %s4, 1024, %s73, [#allocation9], 64, 64, 4
    $region21: #{tpu_custom_call.1} parent=1 // pred_fallthru
      _
    // Predicated region
    $region22: #{tpu_custom_call.1} parent=1 // pred_check
      _
    $region23: #{tpu_custom_call.1} parent=1 // pred_check_branch
      %80 = sbr.rel (0) target = $region25
    $region24: #{tpu_custom_call.1} parent=1 // pred_region
      %s82 = ssub.s32 1024, 1024
      %83 = vsyncadd [#allocation12], %s82
      %s84 = sshll.u32 [#allocation11], 4
      %s85 = int_to_ptr.vmem [resolvable:$true] %s84
      %90 = dma.hbm_to_vmem [thread:$0]  %s5, 1024, %s85, [#allocation12], 64, 64, 4
    $region25: #{tpu_custom_call.1} parent=1 // pred_fallthru
      _
    // Predicated region
    $region26: #{tpu_custom_call.1} parent=1 // pred_check
      _
    $region27: #{tpu_custom_call.1} parent=1 // pred_check_branch
      %92 = sbr.rel (0) target = $region29
    $region28: #{tpu_custom_call.1} parent=1 // pred_region
      %s94 = ssub.s32 1024, 1024
      %95 = vsyncadd [#allocation12], %s94
      %s96 = sshll.u32 [#allocation13], 4
      %s97 = int_to_ptr.vmem [resolvable:$true] %s96
      %102 = dma.hbm_to_vmem [thread:$0]  %s6, 1024, %s97, [#allocation12], 64, 64, 4
    $region29: #{tpu_custom_call.1} parent=1 // pred_fallthru
      _
    // Predicated region
    $region30: #{tpu_custom_call.1} parent=1 // pred_check
      _
    $region31: #{tpu_custom_call.1} parent=1 // pred_check_branch
      %104 = sbr.rel (0) target = $region33
    $region32: #{tpu_custom_call.1} parent=1 // pred_region
      %s106 = ssub.s32 512, 512
      %107 = vsyncadd [#allocation15], %s106
      %s109 = sshll.u32 [#allocation14], 4
      %s110 = int_to_ptr.vmem [resolvable:$true] %s109
      %112 = dma.hbm_to_vmem [thread:$0]  %s7, 512, %s110, [#allocation15]
    $region33: #{tpu_custom_call.1} parent=1 // pred_fallthru
      _
    // Predicated region
    $region34: #{tpu_custom_call.1} parent=1 // pred_check
      _
    $region35: #{tpu_custom_call.1} parent=1 // pred_check_branch
      %114 = sbr.rel (0) target = $region37
    $region36: #{tpu_custom_call.1} parent=1 // pred_region
      %115 = dma.done [#allocation3], 128
    $region37: #{tpu_custom_call.1} parent=1 // pred_fallthru
      _
    // Predicated region
    $region38: #{tpu_custom_call.1} parent=1 // pred_check
      _
    $region39: #{tpu_custom_call.1} parent=1 // pred_check_branch
      %117 = sbr.rel (0) target = $region41
    $region40: #{tpu_custom_call.1} parent=1 // pred_region
      %118 = dma.done [#allocation6], 4096
    $region41: #{tpu_custom_call.1} parent=1 // pred_fallthru
      _
    // Predicated region
    $region42: #{tpu_custom_call.1} parent=1 // pred_check
      _
    $region43: #{tpu_custom_call.1} parent=1 // pred_check_branch
      %120 = sbr.rel (0) target = $region45
    $region44: #{tpu_custom_call.1} parent=1 // pred_region
      %121 = dma.done [#allocation6], 12288
    $region45: #{tpu_custom_call.1} parent=1 // pred_fallthru
      _
    // Predicated region
    $region46: #{tpu_custom_call.1} parent=1 // pred_check
      _
    $region47: #{tpu_custom_call.1} parent=1 // pred_check_branch
      %123 = sbr.rel (0) target = $region49
    $region48: #{tpu_custom_call.1} parent=1 // pred_region
      %124 = dma.done [#allocation9], 3072
    $region49: #{tpu_custom_call.1} parent=1 // pred_fallthru
      _
    // Predicated region
    $region50: #{tpu_custom_call.1} parent=1 // pred_check
      _
    $region51: #{tpu_custom_call.1} parent=1 // pred_check_branch
      %126 = sbr.rel (0) target = $region53
    $region52: #{tpu_custom_call.1} parent=1 // pred_region
      %127 = dma.done [#allocation9], 1024
    $region53: #{tpu_custom_call.1} parent=1 // pred_fallthru
      _
    // Predicated region
    $region54: #{tpu_custom_call.1} parent=1 // pred_check
      _
    $region55: #{tpu_custom_call.1} parent=1 // pred_check_branch
      %129 = sbr.rel (0) target = $region57
    $region56: #{tpu_custom_call.1} parent=1 // pred_region
      %130 = dma.done [#allocation12], 1024
    $region57: #{tpu_custom_call.1} parent=1 // pred_fallthru
      _
    // Predicated region
    $region58: #{tpu_custom_call.1} parent=1 // pred_check
      _
    $region59: #{tpu_custom_call.1} parent=1 // pred_check_branch
      %132 = sbr.rel (0) target = $region61
    $region60: #{tpu_custom_call.1} parent=1 // pred_region
      %133 = dma.done [#allocation12], 1024
    $region61: #{tpu_custom_call.1} parent=1 // pred_fallthru
      _
    // Predicated region
    $region62: #{tpu_custom_call.1} parent=1 // pred_check
      _
    $region63: #{tpu_custom_call.1} parent=1 // pred_check_branch
      %135 = sbr.rel (0) target = $region65
    $region64: #{tpu_custom_call.1} parent=1 // pred_region
      %136 = dma.done [#allocation15], 512
    $region65: #{tpu_custom_call.1} parent=1 // pred_fallthru
      _
    %v138 = vld [vmem:[#allocation2] sm:$0xf]
    %v139 = vld [vmem:[#allocation2 + $0x4] sm:$0xf]
    %v140 = vld [vmem:[#allocation5] sm:$0xff]
    %v141 = vld [vmem:[#allocation5 + $0x8] sm:$0xff]
    %v142 = vld [vmem:[#allocation5 + $0x10] sm:$0xff]
    %v143 = vld [vmem:[#allocation5 + $0x18] sm:$0xff]
    %v144 = vld [vmem:[#allocation5 + $0x20] sm:$0xff]
    %v145 = vld [vmem:[#allocation5 + $0x28] sm:$0xff]
    %v146 = vld [vmem:[#allocation5 + $0x30] sm:$0xff]
    %v147 = vld [vmem:[#allocation5 + $0x38] sm:$0xff]
    %v148 = vld [vmem:[#allocation5 + $0x40] sm:$0xff]
    %v149 = vld [vmem:[#allocation5 + $0x48] sm:$0xff]
    %v150 = vld [vmem:[#allocation5 + $0x50] sm:$0xff]
    %v151 = vld [vmem:[#allocation5 + $0x58] sm:$0xff]
    %v152 = vld [vmem:[#allocation5 + $0x60] sm:$0xff]
    %v153 = vld [vmem:[#allocation5 + $0x68] sm:$0xff]
    %v154 = vld [vmem:[#allocation5 + $0x70] sm:$0xff]
    %v155 = vld [vmem:[#allocation5 + $0x78] sm:$0xff]
    %v156 = vld [vmem:[#allocation5 + $0x80] sm:$0xff]
    %v157 = vld [vmem:[#allocation5 + $0x88] sm:$0xff]
    %v158 = vld [vmem:[#allocation5 + $0x90] sm:$0xff]
    %v159 = vld [vmem:[#allocation5 + $0x98] sm:$0xff]
    %v160 = vld [vmem:[#allocation5 + $0xa0] sm:$0xff]
    %v161 = vld [vmem:[#allocation5 + $0xa8] sm:$0xff]
    %v162 = vld [vmem:[#allocation5 + $0xb0] sm:$0xff]
    %v163 = vld [vmem:[#allocation5 + $0xb8] sm:$0xff]
    %v164 = vld [vmem:[#allocation5 + $0xc0] sm:$0xff]
    %v165 = vld [vmem:[#allocation5 + $0xc8] sm:$0xff]
    %v166 = vld [vmem:[#allocation5 + $0xd0] sm:$0xff]
    %v167 = vld [vmem:[#allocation5 + $0xd8] sm:$0xff]
    %v168 = vld [vmem:[#allocation5 + $0xe0] sm:$0xff]
    %v169 = vld [vmem:[#allocation5 + $0xe8] sm:$0xff]
    %v170 = vld [vmem:[#allocation5 + $0xf0] sm:$0xff]
    %v171 = vld [vmem:[#allocation5 + $0xf8] sm:$0xff]
    %v172 = vld [vmem:[#allocation14] ss:$8 sm:$0xf]
    %v174 = vlaneseq
    %v175 = vshrl.u32 %v174, 7
    %v176 = vsub.s32 0, %v175
    %v177 = vrot.slane %v172, %v176
    %v178 = vlaneseq
    %v179 = vshrl.u32 %v178, 7
    %v180 = vsub.s32 1, %v179
    %v181 = vrot.slane %v172, %v180
    %v182 = vlaneseq
    %v183 = vshrl.u32 %v182, 7
    %v184 = vsub.s32 2, %v183
    %v185 = vrot.slane %v172, %v184
    %v186 = vlaneseq
    %v187 = vshrl.u32 %v186, 7
    %v188 = vsub.s32 3, %v187
    %v189 = vrot.slane %v172, %v188
    %v196 = vunpack.c.l.b16 %v138
    %v197 = vunpack.c.l.b16 %v139
    %v198 = vpack.c.b16 %v197, %v196
    %v232 = vunpack.c.l.b16 %v140
    %v233 = vunpack.c.h.b16 %v140
    %v234 = vunpack.c.l.b16 %v141
    %v235 = vunpack.c.h.b16 %v141
    %v236 = vunpack.c.l.b16 %v142
    %v237 = vunpack.c.h.b16 %v142
    %v238 = vunpack.c.l.b16 %v143
    %v239 = vunpack.c.h.b16 %v143
    %v240 = vunpack.c.l.b16 %v144
    %v241 = vunpack.c.h.b16 %v144
    %v242 = vunpack.c.l.b16 %v145
    %v243 = vunpack.c.h.b16 %v145
    %v244 = vunpack.c.l.b16 %v146
    %v245 = vunpack.c.h.b16 %v146
    %v246 = vunpack.c.l.b16 %v147
    %v247 = vunpack.c.h.b16 %v147
    %v248 = vunpack.c.l.b16 %v148
    %v249 = vunpack.c.h.b16 %v148
    %v250 = vunpack.c.l.b16 %v149
    %v251 = vunpack.c.h.b16 %v149
    %v252 = vunpack.c.l.b16 %v150
    %v253 = vunpack.c.h.b16 %v150
    %v254 = vunpack.c.l.b16 %v151
    %v255 = vunpack.c.h.b16 %v151
    %v256 = vunpack.c.l.b16 %v152
    %v257 = vunpack.c.h.b16 %v152
    %v258 = vunpack.c.l.b16 %v153
    %v259 = vunpack.c.h.b16 %v153
    %v260 = vunpack.c.l.b16 %v154
    %v261 = vunpack.c.h.b16 %v154
    %v262 = vunpack.c.l.b16 %v155
    %v263 = vunpack.c.h.b16 %v155
    %v264 = vunpack.c.l.b16 %v156
    %v265 = vunpack.c.h.b16 %v156
    %v266 = vunpack.c.l.b16 %v157
    %v267 = vunpack.c.h.b16 %v157
    %v268 = vunpack.c.l.b16 %v158
    %v269 = vunpack.c.h.b16 %v158
    %v270 = vunpack.c.l.b16 %v159
    %v271 = vunpack.c.h.b16 %v159
    %v272 = vunpack.c.l.b16 %v160
    %v273 = vunpack.c.h.b16 %v160
    %v274 = vunpack.c.l.b16 %v161
    %v275 = vunpack.c.h.b16 %v161
    %v276 = vunpack.c.l.b16 %v162
    %v277 = vunpack.c.h.b16 %v162
    %v278 = vunpack.c.l.b16 %v163
    %v279 = vunpack.c.h.b16 %v163
    %v280 = vunpack.c.l.b16 %v164
    %v281 = vunpack.c.h.b16 %v164
    %v282 = vunpack.c.l.b16 %v165
    %v283 = vunpack.c.h.b16 %v165
    %v284 = vunpack.c.l.b16 %v166
    %v285 = vunpack.c.h.b16 %v166
    %v286 = vunpack.c.l.b16 %v167
    %v287 = vunpack.c.h.b16 %v167
    %v288 = vunpack.c.l.b16 %v168
    %v289 = vunpack.c.h.b16 %v168
    %v290 = vunpack.c.l.b16 %v169
    %v291 = vunpack.c.h.b16 %v169
    %v292 = vunpack.c.l.b16 %v170
    %v293 = vunpack.c.h.b16 %v170
    %v294 = vunpack.c.l.b16 %v171
    %v295 = vunpack.c.h.b16 %v171
    %v296 = vpack.c.b16 %v236, %v232
    %v297 = vpack.c.b16 %v237, %v233
    %v298 = vpack.c.b16 %v238, %v234
    %v299 = vpack.c.b16 %v239, %v235
    %v300 = vpack.c.b16 %v244, %v240
    %v301 = vpack.c.b16 %v245, %v241
    %v302 = vpack.c.b16 %v246, %v242
    %v303 = vpack.c.b16 %v247, %v243
    %v304 = vpack.c.b16 %v252, %v248
    %v305 = vpack.c.b16 %v253, %v249
    %v306 = vpack.c.b16 %v254, %v250
    %v307 = vpack.c.b16 %v255, %v251
    %v308 = vpack.c.b16 %v260, %v256
    %v309 = vpack.c.b16 %v261, %v257
    %v310 = vpack.c.b16 %v262, %v258
    %v311 = vpack.c.b16 %v263, %v259
    %v312 = vpack.c.b16 %v268, %v264
    %v313 = vpack.c.b16 %v269, %v265
    %v314 = vpack.c.b16 %v270, %v266
    %v315 = vpack.c.b16 %v271, %v267
    %v316 = vpack.c.b16 %v276, %v272
    %v317 = vpack.c.b16 %v277, %v273
    %v318 = vpack.c.b16 %v278, %v274
    %v319 = vpack.c.b16 %v279, %v275
    %v320 = vpack.c.b16 %v284, %v280
    %v321 = vpack.c.b16 %v285, %v281
    %v322 = vpack.c.b16 %v286, %v282
    %v323 = vpack.c.b16 %v287, %v283
    %v324 = vpack.c.b16 %v292, %v288
    %v325 = vpack.c.b16 %v293, %v289
    %v326 = vpack.c.b16 %v294, %v290
    %v327 = vpack.c.b16 %v295, %v291
    %360 = vmatprep.subr.bf16.mxu0 %v325
    %361 = vmatpush1.bf16.msra.mxu0 %v324
    %362 = vmatprep.subr.bf16.mxu0 %v321
    %363 = vmatpush1.bf16.msra.mxu0 %v320
    %364 = vmatprep.subr.bf16.mxu0 %v317
    %365 = vmatpush1.bf16.msra.mxu0 %v316
    %366 = vmatprep.subr.bf16.mxu0 %v313
    %367 = vmatpush1.bf16.msra.mxu0 %v312
    %368 = vmatprep.subr.bf16.mxu0 %v309
    %369 = vmatpush1.bf16.msra.mxu0 %v308
    %370 = vmatprep.subr.bf16.mxu0 %v305
    %371 = vmatpush1.bf16.msra.mxu0 %v304
    %372 = vmatprep.subr.bf16.mxu0 %v301
    %373 = vmatpush1.bf16.msra.mxu0 %v300
    %374 = vmatprep.subr.bf16.mxu0 %v297
    %375 = vmatpush1.bf16.msra.mxu0 %v296
    %376 = vmatprep.subr.bf16.mxu0 0
    %377 = vmatpush2.bf16.msra.mxu0 0
    %378 = vmatprep.subr.bf16.mxu0 0
    %379 = vmatpush2.bf16.msra.mxu0 0
    %380 = vmatprep.subr.bf16.mxu0 0
    %381 = vmatpush2.bf16.msra.mxu0 0
    %382 = vmatprep.subr.bf16.mxu0 0
    %383 = vmatpush2.bf16.msra.mxu0 0
    %384 = vmatprep.subr.bf16.mxu0 0
    %385 = vmatpush2.bf16.msra.mxu0 0
    %386 = vmatprep.subr.bf16.mxu0 0
    %387 = vmatpush2.bf16.msra.mxu0 0
    %388 = vmatprep.subr.bf16.mxu0 0
    %389 = vmatpush2.bf16.msra.mxu0 0
    %390 = vmatprep.subr.bf16.mxu0 0
    %391 = vmatpush2.bf16.msra.mxu0 0
    %392 = vmatprep.mubr.bf16.mxu0 0
    %393 = vmatmul.mubr.bf16.gmra.mxu0 %v198
    %v394 = vpop.f32.mrf.mxu0
    %v395 = vadd.f32 %v177, %v394
    %v396 = vpop.f32.mrf.mxu0
    %v397 = vadd.f32 %v181, %v396
    %v398 = vpop.f32.mrf.mxu0
    %v399 = vadd.f32 %v177, %v398
    %v400 = vpop.f32.mrf.mxu0
    %v401 = vadd.f32 %v181, %v400
    %402 = vdwg.mxu0
    %403 = vmatprep.subr.bf16.mxu0 %v327
    %404 = vmatpush1.bf16.msra.mxu0 %v326
    %405 = vmatprep.subr.bf16.mxu0 %v323
    %406 = vmatpush1.bf16.msra.mxu0 %v322
    %407 = vmatprep.subr.bf16.mxu0 %v319
    %408 = vmatpush1.bf16.msra.mxu0 %v318
    %409 = vmatprep.subr.bf16.mxu0 %v315
    %410 = vmatpush1.bf16.msra.mxu0 %v314
    %411 = vmatprep.subr.bf16.mxu0 %v311
    %412 = vmatpush1.bf16.msra.mxu0 %v310
    %413 = vmatprep.subr.bf16.mxu0 %v307
    %414 = vmatpush1.bf16.msra.mxu0 %v306
    %415 = vmatprep.subr.bf16.mxu0 %v303
    %416 = vmatpush1.bf16.msra.mxu0 %v302
    %417 = vmatprep.subr.bf16.mxu0 %v299
    %418 = vmatpush1.bf16.msra.mxu0 %v298
    %419 = vmatprep.subr.bf16.mxu0 0
    %420 = vmatpush2.bf16.msra.mxu0 0
    %421 = vmatprep.subr.bf16.mxu0 0
    %422 = vmatpush2.bf16.msra.mxu0 0
    %423 = vmatprep.subr.bf16.mxu0 0
    %424 = vmatpush2.bf16.msra.mxu0 0
    %425 = vmatprep.subr.bf16.mxu0 0
    %426 = vmatpush2.bf16.msra.mxu0 0
    %427 = vmatprep.subr.bf16.mxu0 0
    %428 = vmatpush2.bf16.msra.mxu0 0
    %429 = vmatprep.subr.bf16.mxu0 0
    %430 = vmatpush2.bf16.msra.mxu0 0
    %431 = vmatprep.subr.bf16.mxu0 0
    %432 = vmatpush2.bf16.msra.mxu0 0
    %433 = vmatprep.subr.bf16.mxu0 0
    %434 = vmatpush2.bf16.msra.mxu0 0
    %435 = vmatprep.mubr.bf16.mxu0 0
    %436 = vmatmul.mubr.bf16.gmra.mxu0 %v198
    %v437 = vpop.f32.mrf.mxu0
    %v438 = vadd.f32 %v185, %v437
    %v439 = vpop.f32.mrf.mxu0
    %v440 = vadd.f32 %v189, %v439
    %v441 = vpop.f32.mrf.mxu0
    %v442 = vadd.f32 %v185, %v441
    %v443 = vpop.f32.mrf.mxu0
    %v444 = vadd.f32 %v189, %v443
    %445 = vdwg.mxu0
    %v446 = vmul.f32 %v395, 0.5
    %v447 = vmul.f32 %v397, 0.5
    %v448 = vmul.f32 %v438, 0.5
    %v449 = vmul.f32 %v440, 0.5
    %v450 = vmul.f32 %v399, 0.5
    %v451 = vmul.f32 %v401, 0.5
    %v452 = vmul.f32 %v442, 0.5
    %v453 = vmul.f32 %v444, 0.5
    %v454 = vtanh.pop %v446
    %v455 = vtanh.pop %v447
    %v456 = vtanh.pop %v448
    %v457 = vtanh.pop %v449
    %v458 = vtanh.pop %v450
    %v459 = vtanh.pop %v451
    %v460 = vtanh.pop %v452
    %v461 = vtanh.pop %v453
    %v462 = vadd.f32 %v454, 1.0
    %v463 = vadd.f32 %v455, 1.0
    %v464 = vadd.f32 %v456, 1.0
    %v465 = vadd.f32 %v457, 1.0
    %v466 = vadd.f32 %v458, 1.0
    %v467 = vadd.f32 %v459, 1.0
    %v468 = vadd.f32 %v460, 1.0
    %v469 = vadd.f32 %v461, 1.0
    %v470 = vmul.f32 %v462, 0.5
    %v471 = vmul.f32 %v463, 0.5
    %v472 = vmul.f32 %v464, 0.5
    %v473 = vmul.f32 %v465, 0.5
    %v474 = vmul.f32 %v466, 0.5
    %v475 = vmul.f32 %v467, 0.5
    %v476 = vmul.f32 %v468, 0.5
    %v477 = vmul.f32 %v469, 0.5
    %v478 = vpack.c.bf16 %v474, %v470
    %v479 = vpack.c.bf16 %v475, %v471
    %v480 = vpack.c.bf16 %v476, %v472
    %v481 = vpack.c.bf16 %v477, %v473
    %v482 = vld [vmem:[#allocation7] sm:$0xff]
    %v483 = vld [vmem:[#allocation7 + $0x8] sm:$0xf]
    %v484 = vld [vmem:[#allocation7 + $0xc] sm:$0xff]
    %v485 = vld [vmem:[#allocation7 + $0x14] sm:$0xf]
    %v486 = vld [vmem:[#allocation7 + $0x18] sm:$0xff]
    %v487 = vld [vmem:[#allocation7 + $0x20] sm:$0xf]
    %v488 = vld [vmem:[#allocation7 + $0x24] sm:$0xff]
    %v489 = vld [vmem:[#allocation7 + $0x2c] sm:$0xf]
    %v490 = vld [vmem:[#allocation7 + $0x30] sm:$0xff]
    %v491 = vld [vmem:[#allocation7 + $0x38] sm:$0xf]
    %v492 = vld [vmem:[#allocation7 + $0x3c] sm:$0xff]
    %v493 = vld [vmem:[#allocation7 + $0x44] sm:$0xf]
    %v494 = vld [vmem:[#allocation7 + $0x48] sm:$0xff]
    %v495 = vld [vmem:[#allocation7 + $0x50] sm:$0xf]
    %v496 = vld [vmem:[#allocation7 + $0x54] sm:$0xff]
    %v497 = vld [vmem:[#allocation7 + $0x5c] sm:$0xf]
    %v498 = vld [vmem:[#allocation7 + $0x60] sm:$0xff]
    %v499 = vld [vmem:[#allocation7 + $0x68] sm:$0xf]
    %v500 = vld [vmem:[#allocation7 + $0x6c] sm:$0xff]
    %v501 = vld [vmem:[#allocation7 + $0x74] sm:$0xf]
    %v502 = vld [vmem:[#allocation7 + $0x78] sm:$0xff]
    %v503 = vld [vmem:[#allocation7 + $0x80] sm:$0xf]
    %v504 = vld [vmem:[#allocation7 + $0x84] sm:$0xff]
    %v505 = vld [vmem:[#allocation7 + $0x8c] sm:$0xf]
    %v506 = vld [vmem:[#allocation7 + $0x90] sm:$0xff]
    %v507 = vld [vmem:[#allocation7 + $0x98] sm:$0xf]
    %v508 = vld [vmem:[#allocation7 + $0x9c] sm:$0xff]
    %v509 = vld [vmem:[#allocation7 + $0xa4] sm:$0xf]
    %v510 = vld [vmem:[#allocation7 + $0xa8] sm:$0xff]
    %v511 = vld [vmem:[#allocation7 + $0xb0] sm:$0xf]
    %v512 = vld [vmem:[#allocation7 + $0xb4] sm:$0xff]
    %v513 = vld [vmem:[#allocation7 + $0xbc] sm:$0xf]
    %v514 = vld [vmem:[#allocation7 + $0xc0] sm:$0xff]
    %v515 = vld [vmem:[#allocation7 + $0xc8] sm:$0xf]
    %v516 = vld [vmem:[#allocation7 + $0xcc] sm:$0xff]
    %v517 = vld [vmem:[#allocation7 + $0xd4] sm:$0xf]
    %v518 = vld [vmem:[#allocation7 + $0xd8] sm:$0xff]
    %v519 = vld [vmem:[#allocation7 + $0xe0] sm:$0xf]
    %v520 = vld [vmem:[#allocation7 + $0xe4] sm:$0xff]
    %v521 = vld [vmem:[#allocation7 + $0xec] sm:$0xf]
    %v522 = vld [vmem:[#allocation7 + $0xf0] sm:$0xff]
    %v523 = vld [vmem:[#allocation7 + $0xf8] sm:$0xf]
    %v524 = vld [vmem:[#allocation7 + $0xfc] sm:$0xff]
    %v525 = vld [vmem:[#allocation7 + $0x104] sm:$0xf]
    %v526 = vld [vmem:[#allocation7 + $0x108] sm:$0xff]
    %v527 = vld [vmem:[#allocation7 + $0x110] sm:$0xf]
    %v528 = vld [vmem:[#allocation7 + $0x114] sm:$0xff]
    %v529 = vld [vmem:[#allocation7 + $0x11c] sm:$0xf]
    %v530 = vld [vmem:[#allocation7 + $0x120] sm:$0xff]
    %v531 = vld [vmem:[#allocation7 + $0x128] sm:$0xf]
    %v532 = vld [vmem:[#allocation7 + $0x12c] sm:$0xff]
    %v533 = vld [vmem:[#allocation7 + $0x134] sm:$0xf]
    %v534 = vld [vmem:[#allocation7 + $0x138] sm:$0xff]
    %v535 = vld [vmem:[#allocation7 + $0x140] sm:$0xf]
    %v536 = vld [vmem:[#allocation7 + $0x144] sm:$0xff]
    %v537 = vld [vmem:[#allocation7 + $0x14c] sm:$0xf]
    %v538 = vld [vmem:[#allocation7 + $0x150] sm:$0xff]
    %v539 = vld [vmem:[#allocation7 + $0x158] sm:$0xf]
    %v540 = vld [vmem:[#allocation7 + $0x15c] sm:$0xff]
    %v541 = vld [vmem:[#allocation7 + $0x164] sm:$0xf]
    %v542 = vld [vmem:[#allocation7 + $0x168] sm:$0xff]
    %v543 = vld [vmem:[#allocation7 + $0x170] sm:$0xf]
    %v544 = vld [vmem:[#allocation7 + $0x174] sm:$0xff]
    %v545 = vld [vmem:[#allocation7 + $0x17c] sm:$0xf]
    %v546 = vld [vmem:[#allocation7 + $0x180] sm:$0xff]
    %v547 = vld [vmem:[#allocation7 + $0x188] sm:$0xf]
    %v548 = vld [vmem:[#allocation7 + $0x18c] sm:$0xff]
    %v549 = vld [vmem:[#allocation7 + $0x194] sm:$0xf]
    %v550 = vld [vmem:[#allocation7 + $0x198] sm:$0xff]
    %v551 = vld [vmem:[#allocation7 + $0x1a0] sm:$0xf]
    %v552 = vld [vmem:[#allocation7 + $0x1a4] sm:$0xff]
    %v553 = vld [vmem:[#allocation7 + $0x1ac] sm:$0xf]
    %v554 = vld [vmem:[#allocation7 + $0x1b0] sm:$0xff]
    %v555 = vld [vmem:[#allocation7 + $0x1b8] sm:$0xf]
    %v556 = vld [vmem:[#allocation7 + $0x1bc] sm:$0xff]
    %v557 = vld [vmem:[#allocation7 + $0x1c4] sm:$0xf]
    %v558 = vld [vmem:[#allocation7 + $0x1c8] sm:$0xff]
    %v559 = vld [vmem:[#allocation7 + $0x1d0] sm:$0xf]
    %v560 = vld [vmem:[#allocation7 + $0x1d4] sm:$0xff]
    %v561 = vld [vmem:[#allocation7 + $0x1dc] sm:$0xf]
    %v562 = vld [vmem:[#allocation7 + $0x1e0] sm:$0xff]
    %v563 = vld [vmem:[#allocation7 + $0x1e8] sm:$0xf]
    %v564 = vld [vmem:[#allocation7 + $0x1ec] sm:$0xff]
    %v565 = vld [vmem:[#allocation7 + $0x1f4] sm:$0xf]
    %v566 = vld [vmem:[#allocation7 + $0x1f8] sm:$0xff]
    %v567 = vld [vmem:[#allocation7 + $0x200] sm:$0xf]
    %v568 = vld [vmem:[#allocation7 + $0x204] sm:$0xff]
    %v569 = vld [vmem:[#allocation7 + $0x20c] sm:$0xf]
    %v570 = vld [vmem:[#allocation7 + $0x210] sm:$0xff]
    %v571 = vld [vmem:[#allocation7 + $0x218] sm:$0xf]
    %v572 = vld [vmem:[#allocation7 + $0x21c] sm:$0xff]
    %v573 = vld [vmem:[#allocation7 + $0x224] sm:$0xf]
    %v574 = vld [vmem:[#allocation7 + $0x228] sm:$0xff]
    %v575 = vld [vmem:[#allocation7 + $0x230] sm:$0xf]
    %v576 = vld [vmem:[#allocation7 + $0x234] sm:$0xff]
    %v577 = vld [vmem:[#allocation7 + $0x23c] sm:$0xf]
    %v578 = vld [vmem:[#allocation7 + $0x240] sm:$0xff]
    %v579 = vld [vmem:[#allocation7 + $0x248] sm:$0xf]
    %v580 = vld [vmem:[#allocation7 + $0x24c] sm:$0xff]
    %v581 = vld [vmem:[#allocation7 + $0x254] sm:$0xf]
    %v582 = vld [vmem:[#allocation7 + $0x258] sm:$0xff]
    %v583 = vld [vmem:[#allocation7 + $0x260] sm:$0xf]
    %v584 = vld [vmem:[#allocation7 + $0x264] sm:$0xff]
    %v585 = vld [vmem:[#allocation7 + $0x26c] sm:$0xf]
    %v586 = vld [vmem:[#allocation7 + $0x270] sm:$0xff]
    %v587 = vld [vmem:[#allocation7 + $0x278] sm:$0xf]
    %v588 = vld [vmem:[#allocation7 + $0x27c] sm:$0xff]
    %v589 = vld [vmem:[#allocation7 + $0x284] sm:$0xf]
    %v590 = vld [vmem:[#allocation7 + $0x288] sm:$0xff]
    %v591 = vld [vmem:[#allocation7 + $0x290] sm:$0xf]
    %v592 = vld [vmem:[#allocation7 + $0x294] sm:$0xff]
    %v593 = vld [vmem:[#allocation7 + $0x29c] sm:$0xf]
    %v594 = vld [vmem:[#allocation7 + $0x2a0] sm:$0xff]
    %v595 = vld [vmem:[#allocation7 + $0x2a8] sm:$0xf]
    %v596 = vld [vmem:[#allocation7 + $0x2ac] sm:$0xff]
    %v597 = vld [vmem:[#allocation7 + $0x2b4] sm:$0xf]
    %v598 = vld [vmem:[#allocation7 + $0x2b8] sm:$0xff]
    %v599 = vld [vmem:[#allocation7 + $0x2c0] sm:$0xf]
    %v600 = vld [vmem:[#allocation7 + $0x2c4] sm:$0xff]
    %v601 = vld [vmem:[#allocation7 + $0x2cc] sm:$0xf]
    %v602 = vld [vmem:[#allocation7 + $0x2d0] sm:$0xff]
    %v603 = vld [vmem:[#allocation7 + $0x2d8] sm:$0xf]
    %v604 = vld [vmem:[#allocation7 + $0x2dc] sm:$0xff]
    %v605 = vld [vmem:[#allocation7 + $0x2e4] sm:$0xf]
    %v606 = vld [vmem:[#allocation7 + $0x2e8] sm:$0xff]
    %v607 = vld [vmem:[#allocation7 + $0x2f0] sm:$0xf]
    %v608 = vld [vmem:[#allocation7 + $0x2f4] sm:$0xff]
    %v609 = vld [vmem:[#allocation7 + $0x2fc] sm:$0xf]
    %s610 = scalar_lea.vmem [#allocation14], 1
    %v611 = vld [vmem:[%s610] ss:$8 sm:$0x7]
    %v613 = vlaneseq
    %v614 = vshrl.u32 %v613, 7
    %v615 = vsub.s32 0, %v614
    %v616 = vrot.slane %v611, %v615
    %v617 = vlaneseq
    %v618 = vshrl.u32 %v617, 7
    %v619 = vsub.s32 1, %v618
    %v620 = vrot.slane %v611, %v619
    %v621 = vlaneseq
    %v622 = vshrl.u32 %v621, 7
    %v623 = vsub.s32 2, %v622
    %v624 = vrot.slane %v611, %v623
    %v756 = vunpack.c.l.b16 %v482
    %v757 = vunpack.c.h.b16 %v482
    %v758 = vunpack.c.l.b16 %v483
    %v759 = vunpack.c.l.b16 %v484
    %v760 = vunpack.c.h.b16 %v484
    %v761 = vunpack.c.l.b16 %v485
    %v762 = vunpack.c.l.b16 %v486
    %v763 = vunpack.c.h.b16 %v486
    %v764 = vunpack.c.l.b16 %v487
    %v765 = vunpack.c.l.b16 %v488
    %v766 = vunpack.c.h.b16 %v488
    %v767 = vunpack.c.l.b16 %v489
    %v768 = vunpack.c.l.b16 %v490
    %v769 = vunpack.c.h.b16 %v490
    %v770 = vunpack.c.l.b16 %v491
    %v771 = vunpack.c.l.b16 %v492
    %v772 = vunpack.c.h.b16 %v492
    %v773 = vunpack.c.l.b16 %v493
    %v774 = vunpack.c.l.b16 %v494
    %v775 = vunpack.c.h.b16 %v494
    %v776 = vunpack.c.l.b16 %v495
    %v777 = vunpack.c.l.b16 %v496
    %v778 = vunpack.c.h.b16 %v496
    %v779 = vunpack.c.l.b16 %v497
    %v780 = vunpack.c.l.b16 %v498
    %v781 = vunpack.c.h.b16 %v498
    %v782 = vunpack.c.l.b16 %v499
    %v783 = vunpack.c.l.b16 %v500
    %v784 = vunpack.c.h.b16 %v500
    %v785 = vunpack.c.l.b16 %v501
    %v786 = vunpack.c.l.b16 %v502
    %v787 = vunpack.c.h.b16 %v502
    %v788 = vunpack.c.l.b16 %v503
    %v789 = vunpack.c.l.b16 %v504
    %v790 = vunpack.c.h.b16 %v504
    %v791 = vunpack.c.l.b16 %v505
    %v792 = vunpack.c.l.b16 %v506
    %v793 = vunpack.c.h.b16 %v506
    %v794 = vunpack.c.l.b16 %v507
    %v795 = vunpack.c.l.b16 %v508
    %v796 = vunpack.c.h.b16 %v508
    %v797 = vunpack.c.l.b16 %v509
    %v798 = vunpack.c.l.b16 %v510
    %v799 = vunpack.c.h.b16 %v510
    %v800 = vunpack.c.l.b16 %v511
    %v801 = vunpack.c.l.b16 %v512
    %v802 = vunpack.c.h.b16 %v512
    %v803 = vunpack.c.l.b16 %v513
    %v804 = vunpack.c.l.b16 %v514
    %v805 = vunpack.c.h.b16 %v514
    %v806 = vunpack.c.l.b16 %v515
    %v807 = vunpack.c.l.b16 %v516
    %v808 = vunpack.c.h.b16 %v516
    %v809 = vunpack.c.l.b16 %v517
    %v810 = vunpack.c.l.b16 %v518
    %v811 = vunpack.c.h.b16 %v518
    %v812 = vunpack.c.l.b16 %v519
    %v813 = vunpack.c.l.b16 %v520
    %v814 = vunpack.c.h.b16 %v520
    %v815 = vunpack.c.l.b16 %v521
    %v816 = vunpack.c.l.b16 %v522
    %v817 = vunpack.c.h.b16 %v522
    %v818 = vunpack.c.l.b16 %v523
    %v819 = vunpack.c.l.b16 %v524
    %v820 = vunpack.c.h.b16 %v524
    %v821 = vunpack.c.l.b16 %v525
    %v822 = vunpack.c.l.b16 %v526
    %v823 = vunpack.c.h.b16 %v526
    %v824 = vunpack.c.l.b16 %v527
    %v825 = vunpack.c.l.b16 %v528
    %v826 = vunpack.c.h.b16 %v528
    %v827 = vunpack.c.l.b16 %v529
    %v828 = vunpack.c.l.b16 %v530
    %v829 = vunpack.c.h.b16 %v530
    %v830 = vunpack.c.l.b16 %v531
    %v831 = vunpack.c.l.b16 %v532
    %v832 = vunpack.c.h.b16 %v532
    %v833 = vunpack.c.l.b16 %v533
    %v834 = vunpack.c.l.b16 %v534
    %v835 = vunpack.c.h.b16 %v534
    %v836 = vunpack.c.l.b16 %v535
    %v837 = vunpack.c.l.b16 %v536
    %v838 = vunpack.c.h.b16 %v536
    %v839 = vunpack.c.l.b16 %v537
    %v840 = vunpack.c.l.b16 %v538
    %v841 = vunpack.c.h.b16 %v538
    %v842 = vunpack.c.l.b16 %v539
    %v843 = vunpack.c.l.b16 %v540
    %v844 = vunpack.c.h.b16 %v540
    %v845 = vunpack.c.l.b16 %v541
    %v846 = vunpack.c.l.b16 %v542
    %v847 = vunpack.c.h.b16 %v542
    %v848 = vunpack.c.l.b16 %v543
    %v849 = vunpack.c.l.b16 %v544
    %v850 = vunpack.c.h.b16 %v544
    %v851 = vunpack.c.l.b16 %v545
    %v852 = vunpack.c.l.b16 %v546
    %v853 = vunpack.c.h.b16 %v546
    %v854 = vunpack.c.l.b16 %v547
    %v855 = vunpack.c.l.b16 %v548
    %v856 = vunpack.c.h.b16 %v548
    %v857 = vunpack.c.l.b16 %v549
    %v858 = vunpack.c.l.b16 %v550
    %v859 = vunpack.c.h.b16 %v550
    %v860 = vunpack.c.l.b16 %v551
    %v861 = vunpack.c.l.b16 %v552
    %v862 = vunpack.c.h.b16 %v552
    %v863 = vunpack.c.l.b16 %v553
    %v864 = vunpack.c.l.b16 %v554
    %v865 = vunpack.c.h.b16 %v554
    %v866 = vunpack.c.l.b16 %v555
    %v867 = vunpack.c.l.b16 %v556
    %v868 = vunpack.c.h.b16 %v556
    %v869 = vunpack.c.l.b16 %v557
    %v870 = vunpack.c.l.b16 %v558
    %v871 = vunpack.c.h.b16 %v558
    %v872 = vunpack.c.l.b16 %v559
    %v873 = vunpack.c.l.b16 %v560
    %v874 = vunpack.c.h.b16 %v560
    %v875 = vunpack.c.l.b16 %v561
    %v876 = vunpack.c.l.b16 %v562
    %v877 = vunpack.c.h.b16 %v562
    %v878 = vunpack.c.l.b16 %v563
    %v879 = vunpack.c.l.b16 %v564
    %v880 = vunpack.c.h.b16 %v564
    %v881 = vunpack.c.l.b16 %v565
    %v882 = vunpack.c.l.b16 %v566
    %v883 = vunpack.c.h.b16 %v566
    %v884 = vunpack.c.l.b16 %v567
    %v885 = vunpack.c.l.b16 %v568
    %v886 = vunpack.c.h.b16 %v568
    %v887 = vunpack.c.l.b16 %v569
    %v888 = vunpack.c.l.b16 %v570
    %v889 = vunpack.c.h.b16 %v570
    %v890 = vunpack.c.l.b16 %v571
    %v891 = vunpack.c.l.b16 %v572
    %v892 = vunpack.c.h.b16 %v572
    %v893 = vunpack.c.l.b16 %v573
    %v894 = vunpack.c.l.b16 %v574
    %v895 = vunpack.c.h.b16 %v574
    %v896 = vunpack.c.l.b16 %v575
    %v897 = vunpack.c.l.b16 %v576
    %v898 = vunpack.c.h.b16 %v576
    %v899 = vunpack.c.l.b16 %v577
    %v900 = vunpack.c.l.b16 %v578
    %v901 = vunpack.c.h.b16 %v578
    %v902 = vunpack.c.l.b16 %v579
    %v903 = vunpack.c.l.b16 %v580
    %v904 = vunpack.c.h.b16 %v580
    %v905 = vunpack.c.l.b16 %v581
    %v906 = vunpack.c.l.b16 %v582
    %v907 = vunpack.c.h.b16 %v582
    %v908 = vunpack.c.l.b16 %v583
    %v909 = vunpack.c.l.b16 %v584
    %v910 = vunpack.c.h.b16 %v584
    %v911 = vunpack.c.l.b16 %v585
    %v912 = vunpack.c.l.b16 %v586
    %v913 = vunpack.c.h.b16 %v586
    %v914 = vunpack.c.l.b16 %v587
    %v915 = vunpack.c.l.b16 %v588
    %v916 = vunpack.c.h.b16 %v588
    %v917 = vunpack.c.l.b16 %v589
    %v918 = vunpack.c.l.b16 %v590
    %v919 = vunpack.c.h.b16 %v590
    %v920 = vunpack.c.l.b16 %v591
    %v921 = vunpack.c.l.b16 %v592
    %v922 = vunpack.c.h.b16 %v592
    %v923 = vunpack.c.l.b16 %v593
    %v924 = vunpack.c.l.b16 %v594
    %v925 = vunpack.c.h.b16 %v594
    %v926 = vunpack.c.l.b16 %v595
    %v927 = vunpack.c.l.b16 %v596
    %v928 = vunpack.c.h.b16 %v596
    %v929 = vunpack.c.l.b16 %v597
    %v930 = vunpack.c.l.b16 %v598
    %v931 = vunpack.c.h.b16 %v598
    %v932 = vunpack.c.l.b16 %v599
    %v933 = vunpack.c.l.b16 %v600
    %v934 = vunpack.c.h.b16 %v600
    %v935 = vunpack.c.l.b16 %v601
    %v936 = vunpack.c.l.b16 %v602
    %v937 = vunpack.c.h.b16 %v602
    %v938 = vunpack.c.l.b16 %v603
    %v939 = vunpack.c.l.b16 %v604
    %v940 = vunpack.c.h.b16 %v604
    %v941 = vunpack.c.l.b16 %v605
    %v942 = vunpack.c.l.b16 %v606
    %v943 = vunpack.c.h.b16 %v606
    %v944 = vunpack.c.l.b16 %v607
    %v945 = vunpack.c.l.b16 %v608
    %v946 = vunpack.c.h.b16 %v608
    %v947 = vunpack.c.l.b16 %v609
    %v948 = vpack.c.b16 %v759, %v756
    %v949 = vpack.c.b16 %v760, %v757
    %v950 = vpack.c.b16 %v761, %v758
    %v951 = vpack.c.b16 %v765, %v762
    %v952 = vpack.c.b16 %v766, %v763
    %v953 = vpack.c.b16 %v767, %v764
    %v954 = vpack.c.b16 %v771, %v768
    %v955 = vpack.c.b16 %v772, %v769
    %v956 = vpack.c.b16 %v773, %v770
    %v957 = vpack.c.b16 %v777, %v774
    %v958 = vpack.c.b16 %v778, %v775
    %v959 = vpack.c.b16 %v779, %v776
    %v960 = vpack.c.b16 %v783, %v780
    %v961 = vpack.c.b16 %v784, %v781
    %v962 = vpack.c.b16 %v785, %v782
    %v963 = vpack.c.b16 %v789, %v786
    %v964 = vpack.c.b16 %v790, %v787
    %v965 = vpack.c.b16 %v791, %v788
    %v966 = vpack.c.b16 %v795, %v792
    %v967 = vpack.c.b16 %v796, %v793
    %v968 = vpack.c.b16 %v797, %v794
    %v969 = vpack.c.b16 %v801, %v798
    %v970 = vpack.c.b16 %v802, %v799
    %v971 = vpack.c.b16 %v803, %v800
    %v972 = vpack.c.b16 %v807, %v804
    %v973 = vpack.c.b16 %v808, %v805
    %v974 = vpack.c.b16 %v809, %v806
    %v975 = vpack.c.b16 %v813, %v810
    %v976 = vpack.c.b16 %v814, %v811
    %v977 = vpack.c.b16 %v815, %v812
    %v978 = vpack.c.b16 %v819, %v816
    %v979 = vpack.c.b16 %v820, %v817
    %v980 = vpack.c.b16 %v821, %v818
    %v981 = vpack.c.b16 %v825, %v822
    %v982 = vpack.c.b16 %v826, %v823
    %v983 = vpack.c.b16 %v827, %v824
    %v984 = vpack.c.b16 %v831, %v828
    %v985 = vpack.c.b16 %v832, %v829
    %v986 = vpack.c.b16 %v833, %v830
    %v987 = vpack.c.b16 %v837, %v834
    %v988 = vpack.c.b16 %v838, %v835
    %v989 = vpack.c.b16 %v839, %v836
    %v990 = vpack.c.b16 %v843, %v840
    %v991 = vpack.c.b16 %v844, %v841
    %v992 = vpack.c.b16 %v845, %v842
    %v993 = vpack.c.b16 %v849, %v846
    %v994 = vpack.c.b16 %v850, %v847
    %v995 = vpack.c.b16 %v851, %v848
    %v996 = vpack.c.b16 %v855, %v852
    %v997 = vpack.c.b16 %v856, %v853
    %v998 = vpack.c.b16 %v857, %v854
    %v999 = vpack.c.b16 %v861, %v858
    %v1000 = vpack.c.b16 %v862, %v859
    %v1001 = vpack.c.b16 %v863, %v860
    %v1002 = vpack.c.b16 %v867, %v864
    %v1003 = vpack.c.b16 %v868, %v865
    %v1004 = vpack.c.b16 %v869, %v866
    %v1005 = vpack.c.b16 %v873, %v870
    %v1006 = vpack.c.b16 %v874, %v871
    %v1007 = vpack.c.b16 %v875, %v872
    %v1008 = vpack.c.b16 %v879, %v876
    %v1009 = vpack.c.b16 %v880, %v877
    %v1010 = vpack.c.b16 %v881, %v878
    %v1011 = vpack.c.b16 %v885, %v882
    %v1012 = vpack.c.b16 %v886, %v883
    %v1013 = vpack.c.b16 %v887, %v884
    %v1014 = vpack.c.b16 %v891, %v888
    %v1015 = vpack.c.b16 %v892, %v889
    %v1016 = vpack.c.b16 %v893, %v890
    %v1017 = vpack.c.b16 %v897, %v894
    %v1018 = vpack.c.b16 %v898, %v895
    %v1019 = vpack.c.b16 %v899, %v896
    %v1020 = vpack.c.b16 %v903, %v900
    %v1021 = vpack.c.b16 %v904, %v901
    %v1022 = vpack.c.b16 %v905, %v902
    %v1023 = vpack.c.b16 %v909, %v906
    %v1024 = vpack.c.b16 %v910, %v907
    %v1025 = vpack.c.b16 %v911, %v908
    %v1026 = vpack.c.b16 %v915, %v912
    %v1027 = vpack.c.b16 %v916, %v913
    %v1028 = vpack.c.b16 %v917, %v914
    %v1029 = vpack.c.b16 %v921, %v918
    %v1030 = vpack.c.b16 %v922, %v919
    %v1031 = vpack.c.b16 %v923, %v920
    %v1032 = vpack.c.b16 %v927, %v924
    %v1033 = vpack.c.b16 %v928, %v925
    %v1034 = vpack.c.b16 %v929, %v926
    %v1035 = vpack.c.b16 %v933, %v930
    %v1036 = vpack.c.b16 %v934, %v931
    %v1037 = vpack.c.b16 %v935, %v932
    %v1038 = vpack.c.b16 %v939, %v936
    %v1039 = vpack.c.b16 %v940, %v937
    %v1040 = vpack.c.b16 %v941, %v938
    %v1041 = vpack.c.b16 %v945, %v942
    %v1042 = vpack.c.b16 %v946, %v943
    %v1043 = vpack.c.b16 %v947, %v944
    %1140 = vmatprep.subr.bf16.mxu0 %v970
    %1141 = vmatpush1.bf16.msra.mxu0 %v969
    %1142 = vmatprep.subr.bf16.mxu0 %v967
    %1143 = vmatpush1.bf16.msra.mxu0 %v966
    %1144 = vmatprep.subr.bf16.mxu0 %v964
    %1145 = vmatpush1.bf16.msra.mxu0 %v963
    %1146 = vmatprep.subr.bf16.mxu0 %v961
    %1147 = vmatpush1.bf16.msra.mxu0 %v960
    %1148 = vmatprep.subr.bf16.mxu0 %v958
    %1149 = vmatpush1.bf16.msra.mxu0 %v957
    %1150 = vmatprep.subr.bf16.mxu0 %v955
    %1151 = vmatpush1.bf16.msra.mxu0 %v954
    %1152 = vmatprep.subr.bf16.mxu0 %v952
    %1153 = vmatpush1.bf16.msra.mxu0 %v951
    %1154 = vmatprep.subr.bf16.mxu0 %v949
    %1155 = vmatpush1.bf16.msra.mxu0 %v948
    %1156 = vmatprep.subr.bf16.mxu0 %v994
    %1157 = vmatpush2.bf16.msra.mxu0 %v993
    %1158 = vmatprep.subr.bf16.mxu0 %v991
    %1159 = vmatpush2.bf16.msra.mxu0 %v990
    %1160 = vmatprep.subr.bf16.mxu0 %v988
    %1161 = vmatpush2.bf16.msra.mxu0 %v987
    %1162 = vmatprep.subr.bf16.mxu0 %v985
    %1163 = vmatpush2.bf16.msra.mxu0 %v984
    %1164 = vmatprep.subr.bf16.mxu0 %v982
    %1165 = vmatpush2.bf16.msra.mxu0 %v981
    %1166 = vmatprep.subr.bf16.mxu0 %v979
    %1167 = vmatpush2.bf16.msra.mxu0 %v978
    %1168 = vmatprep.subr.bf16.mxu0 %v976
    %1169 = vmatpush2.bf16.msra.mxu0 %v975
    %1170 = vmatprep.subr.bf16.mxu0 %v973
    %1171 = vmatpush2.bf16.msra.mxu0 %v972
    %1172 = vmatprep.mubr.bf16.mxu0 %v479
    %1173 = vmatmul.mubr.bf16.gmra.mxu0 %v478
    %v1174 = vpop.f32.mrf.mxu0
    %v1175 = vadd.f32 %v616, %v1174
    %v1176 = vpop.f32.mrf.mxu0
    %v1177 = vadd.f32 %v620, %v1176
    %v1178 = vpop.f32.mrf.mxu0
    %v1179 = vadd.f32 %v616, %v1178
    %v1180 = vpop.f32.mrf.mxu0
    %v1181 = vadd.f32 %v620, %v1180
    %1182 = vdwg.mxu0
    %1183 = vmatprep.subr.bf16.mxu0 %v1018
    %1184 = vmatpush1.bf16.msra.mxu0 %v1017
    %1185 = vmatprep.subr.bf16.mxu0 %v1015
    %1186 = vmatpush1.bf16.msra.mxu0 %v1014
    %1187 = vmatprep.subr.bf16.mxu0 %v1012
    %1188 = vmatpush1.bf16.msra.mxu0 %v1011
    %1189 = vmatprep.subr.bf16.mxu0 %v1009
    %1190 = vmatpush1.bf16.msra.mxu0 %v1008
    %1191 = vmatprep.subr.bf16.mxu0 %v1006
    %1192 = vmatpush1.bf16.msra.mxu0 %v1005
    %1193 = vmatprep.subr.bf16.mxu0 %v1003
    %1194 = vmatpush1.bf16.msra.mxu0 %v1002
    %1195 = vmatprep.subr.bf16.mxu0 %v1000
    %1196 = vmatpush1.bf16.msra.mxu0 %v999
    %1197 = vmatprep.subr.bf16.mxu0 %v997
    %1198 = vmatpush1.bf16.msra.mxu0 %v996
    %1199 = vmatprep.subr.bf16.mxu0 %v1042
    %1200 = vmatpush2.bf16.msra.mxu0 %v1041
    %1201 = vmatprep.subr.bf16.mxu0 %v1039
    %1202 = vmatpush2.bf16.msra.mxu0 %v1038
    %1203 = vmatprep.subr.bf16.mxu0 %v1036
    %1204 = vmatpush2.bf16.msra.mxu0 %v1035
    %1205 = vmatprep.subr.bf16.mxu0 %v1033
    %1206 = vmatpush2.bf16.msra.mxu0 %v1032
    %1207 = vmatprep.subr.bf16.mxu0 %v1030
    %1208 = vmatpush2.bf16.msra.mxu0 %v1029
    %1209 = vmatprep.subr.bf16.mxu0 %v1027
    %1210 = vmatpush2.bf16.msra.mxu0 %v1026
    %1211 = vmatprep.subr.bf16.mxu0 %v1024
    %1212 = vmatpush2.bf16.msra.mxu0 %v1023
    %1213 = vmatprep.subr.bf16.mxu0 %v1021
    %1214 = vmatpush2.bf16.msra.mxu0 %v1020
    %1215 = vmatprep.mubr.bf16.mxu0 %v481
    %1216 = vmatmul.mubr.bf16.gmra.mxu0 %v480
    %v1217 = vpop.f32.mrf.mxu0
    %v1218 = vadd.f32 %v1175, %v1217
    %v1219 = vpop.f32.mrf.mxu0
    %v1220 = vadd.f32 %v1177, %v1219
    %v1221 = vpop.f32.mrf.mxu0
    %v1222 = vadd.f32 %v1179, %v1221
    %v1223 = vpop.f32.mrf.mxu0
    %v1224 = vadd.f32 %v1181, %v1223
    %1225 = vdwg.mxu0
    %1226 = vmatprep.subr.bf16.mxu0 0
    %1227 = vmatpush1.bf16.msra.mxu0 %v971
    %1228 = vmatprep.subr.bf16.mxu0 0
    %1229 = vmatpush1.bf16.msra.mxu0 %v968
    %1230 = vmatprep.subr.bf16.mxu0 0
    %1231 = vmatpush1.bf16.msra.mxu0 %v965
    %1232 = vmatprep.subr.bf16.mxu0 0
    %1233 = vmatpush1.bf16.msra.mxu0 %v962
    %1234 = vmatprep.subr.bf16.mxu0 0
    %1235 = vmatpush1.bf16.msra.mxu0 %v959
    %1236 = vmatprep.subr.bf16.mxu0 0
    %1237 = vmatpush1.bf16.msra.mxu0 %v956
    %1238 = vmatprep.subr.bf16.mxu0 0
    %1239 = vmatpush1.bf16.msra.mxu0 %v953
    %1240 = vmatprep.subr.bf16.mxu0 0
    %1241 = vmatpush1.bf16.msra.mxu0 %v950
    %1242 = vmatprep.subr.bf16.mxu0 0
    %1243 = vmatpush2.bf16.msra.mxu0 %v995
    %1244 = vmatprep.subr.bf16.mxu0 0
    %1245 = vmatpush2.bf16.msra.mxu0 %v992
    %1246 = vmatprep.subr.bf16.mxu0 0
    %1247 = vmatpush2.bf16.msra.mxu0 %v989
    %1248 = vmatprep.subr.bf16.mxu0 0
    %1249 = vmatpush2.bf16.msra.mxu0 %v986
    %1250 = vmatprep.subr.bf16.mxu0 0
    %1251 = vmatpush2.bf16.msra.mxu0 %v983
    %1252 = vmatprep.subr.bf16.mxu0 0
    %1253 = vmatpush2.bf16.msra.mxu0 %v980
    %1254 = vmatprep.subr.bf16.mxu0 0
    %1255 = vmatpush2.bf16.msra.mxu0 %v977
    %1256 = vmatprep.subr.bf16.mxu0 0
    %1257 = vmatpush2.bf16.msra.mxu0 %v974
    %1258 = vmatprep.mubr.bf16.mxu0 %v479
    %1259 = vmatmul.mubr.bf16.gmra.mxu0 %v478
    %v1260 = vpop.f32.mrf.mxu0
    %v1261 = vadd.f32 %v624, %v1260
    %v1262 = vpop.f32.mrf.mxu0
    %v1263 = vpop.f32.mrf.mxu0
    %v1264 = vadd.f32 %v624, %v1263
    %v1265 = vpop.f32.mrf.mxu0
    %1266 = vdwg.mxu0
    %1267 = vmatprep.subr.bf16.mxu0 0
    %1268 = vmatpush1.bf16.msra.mxu0 %v1019
    %1269 = vmatprep.subr.bf16.mxu0 0
    %1270 = vmatpush1.bf16.msra.mxu0 %v1016
    %1271 = vmatprep.subr.bf16.mxu0 0
    %1272 = vmatpush1.bf16.msra.mxu0 %v1013
    %1273 = vmatprep.subr.bf16.mxu0 0
    %1274 = vmatpush1.bf16.msra.mxu0 %v1010
    %1275 = vmatprep.subr.bf16.mxu0 0
    %1276 = vmatpush1.bf16.msra.mxu0 %v1007
    %1277 = vmatprep.subr.bf16.mxu0 0
    %1278 = vmatpush1.bf16.msra.mxu0 %v1004
    %1279 = vmatprep.subr.bf16.mxu0 0
    %1280 = vmatpush1.bf16.msra.mxu0 %v1001
    %1281 = vmatprep.subr.bf16.mxu0 0
    %1282 = vmatpush1.bf16.msra.mxu0 %v998
    %1283 = vmatprep.subr.bf16.mxu0 0
    %1284 = vmatpush2.bf16.msra.mxu0 %v1043
    %1285 = vmatprep.subr.bf16.mxu0 0
    %1286 = vmatpush2.bf16.msra.mxu0 %v1040
    %1287 = vmatprep.subr.bf16.mxu0 0
    %1288 = vmatpush2.bf16.msra.mxu0 %v1037
    %1289 = vmatprep.subr.bf16.mxu0 0
    %1290 = vmatpush2.bf16.msra.mxu0 %v1034
    %1291 = vmatprep.subr.bf16.mxu0 0
    %1292 = vmatpush2.bf16.msra.mxu0 %v1031
    %1293 = vmatprep.subr.bf16.mxu0 0
    %1294 = vmatpush2.bf16.msra.mxu0 %v1028
    %1295 = vmatprep.subr.bf16.mxu0 0
    %1296 = vmatpush2.bf16.msra.mxu0 %v1025
    %1297 = vmatprep.subr.bf16.mxu0 0
    %1298 = vmatpush2.bf16.msra.mxu0 %v1022
    %1299 = vmatprep.mubr.bf16.mxu0 %v481
    %1300 = vmatmul.mubr.bf16.gmra.mxu0 %v480
    %v1301 = vpop.f32.mrf.mxu0
    %v1302 = vadd.f32 %v1261, %v1301
    %v1303 = vpop.f32.mrf.mxu0
    %v1304 = vpop.f32.mrf.mxu0
    %v1305 = vadd.f32 %v1264, %v1304
    %v1306 = vpop.f32.mrf.mxu0
    %1307 = vdwg.mxu0
    %v1308 = vmul.f32 %v1218, 0.5
    %v1309 = vmul.f32 %v1220, 0.5
    %v1310 = vmul.f32 %v1302, 0.5
    %v1311 = vmul.f32 %v1222, 0.5
    %v1312 = vmul.f32 %v1224, 0.5
    %v1313 = vmul.f32 %v1305, 0.5
    %v1314 = vtanh.pop %v1308
    %v1315 = vtanh.pop %v1309
    %v1316 = vtanh.pop %v1310
    %v1317 = vtanh.pop %v1311
    %v1318 = vtanh.pop %v1312
    %v1319 = vtanh.pop %v1313
    %v1320 = vadd.f32 %v1314, 1.0
    %v1321 = vadd.f32 %v1315, 1.0
    %v1322 = vadd.f32 %v1316, 1.0
    %v1323 = vadd.f32 %v1317, 1.0
    %v1324 = vadd.f32 %v1318, 1.0
    %v1325 = vadd.f32 %v1319, 1.0
    %v1326 = vmul.f32 %v1320, 0.5
    %v1327 = vmul.f32 %v1321, 0.5
    %v1328 = vmul.f32 %v1322, 0.5
    %v1329 = vmul.f32 %v1323, 0.5
    %v1330 = vmul.f32 %v1324, 0.5
    %v1331 = vmul.f32 %v1325, 0.5
    %v1332 = vpack.c.bf16 %v1329, %v1326
    %v1333 = vpack.c.bf16 %v1330, %v1327
    %v1334 = vpack.c.bf16 %v1331, %v1328
    %v1335 = vld [vmem:[#allocation8] sm:$0xf]
    %v1336 = vld [vmem:[#allocation8 + $0x4] sm:$0xf]
    %v1337 = vld [vmem:[#allocation8 + $0x8] sm:$0xf]
    %v1338 = vld [vmem:[#allocation8 + $0xc] sm:$0xf]
    %v1339 = vld [vmem:[#allocation8 + $0x10] sm:$0xf]
    %v1340 = vld [vmem:[#allocation8 + $0x14] sm:$0xf]
    %v1341 = vld [vmem:[#allocation8 + $0x18] sm:$0xf]
    %v1342 = vld [vmem:[#allocation8 + $0x1c] sm:$0xf]
    %v1343 = vld [vmem:[#allocation8 + $0x20] sm:$0xf]
    %v1344 = vld [vmem:[#allocation8 + $0x24] sm:$0xf]
    %v1345 = vld [vmem:[#allocation8 + $0x28] sm:$0xf]
    %v1346 = vld [vmem:[#allocation8 + $0x2c] sm:$0xf]
    %v1347 = vld [vmem:[#allocation8 + $0x30] sm:$0xf]
    %v1348 = vld [vmem:[#allocation8 + $0x34] sm:$0xf]
    %v1349 = vld [vmem:[#allocation8 + $0x38] sm:$0xf]
    %v1350 = vld [vmem:[#allocation8 + $0x3c] sm:$0xf]
    %v1351 = vld [vmem:[#allocation8 + $0x40] sm:$0xf]
    %v1352 = vld [vmem:[#allocation8 + $0x44] sm:$0xf]
    %v1353 = vld [vmem:[#allocation8 + $0x48] sm:$0xf]
    %v1354 = vld [vmem:[#allocation8 + $0x4c] sm:$0xf]
    %v1355 = vld [vmem:[#allocation8 + $0x50] sm:$0xf]
    %v1356 = vld [vmem:[#allocation8 + $0x54] sm:$0xf]
    %v1357 = vld [vmem:[#allocation8 + $0x58] sm:$0xf]
    %v1358 = vld [vmem:[#allocation8 + $0x5c] sm:$0xf]
    %v1359 = vld [vmem:[#allocation8 + $0x60] sm:$0xf]
    %v1360 = vld [vmem:[#allocation8 + $0x64] sm:$0xf]
    %v1361 = vld [vmem:[#allocation8 + $0x68] sm:$0xf]
    %v1362 = vld [vmem:[#allocation8 + $0x6c] sm:$0xf]
    %v1363 = vld [vmem:[#allocation8 + $0x70] sm:$0xf]
    %v1364 = vld [vmem:[#allocation8 + $0x74] sm:$0xf]
    %v1365 = vld [vmem:[#allocation8 + $0x78] sm:$0xf]
    %v1366 = vld [vmem:[#allocation8 + $0x7c] sm:$0xf]
    %v1367 = vld [vmem:[#allocation8 + $0x80] sm:$0xf]
    %v1368 = vld [vmem:[#allocation8 + $0x84] sm:$0xf]
    %v1369 = vld [vmem:[#allocation8 + $0x88] sm:$0xf]
    %v1370 = vld [vmem:[#allocation8 + $0x8c] sm:$0xf]
    %v1371 = vld [vmem:[#allocation8 + $0x90] sm:$0xf]
    %v1372 = vld [vmem:[#allocation8 + $0x94] sm:$0xf]
    %v1373 = vld [vmem:[#allocation8 + $0x98] sm:$0xf]
    %v1374 = vld [vmem:[#allocation8 + $0x9c] sm:$0xf]
    %v1375 = vld [vmem:[#allocation8 + $0xa0] sm:$0xf]
    %v1376 = vld [vmem:[#allocation8 + $0xa4] sm:$0xf]
    %v1377 = vld [vmem:[#allocation8 + $0xa8] sm:$0xf]
    %v1378 = vld [vmem:[#allocation8 + $0xac] sm:$0xf]
    %v1379 = vld [vmem:[#allocation8 + $0xb0] sm:$0xf]
    %v1380 = vld [vmem:[#allocation8 + $0xb4] sm:$0xf]
    %v1381 = vld [vmem:[#allocation8 + $0xb8] sm:$0xf]
    %v1382 = vld [vmem:[#allocation8 + $0xbc] sm:$0xf]
    %v1383 = vld [vmem:[#allocation14 + $0x2] ss:$0 sm:$0xff]
    %v1432 = vunpack.c.l.b16 %v1335
    %v1433 = vunpack.c.l.b16 %v1336
    %v1434 = vunpack.c.l.b16 %v1337
    %v1435 = vunpack.c.l.b16 %v1338
    %v1436 = vunpack.c.l.b16 %v1339
    %v1437 = vunpack.c.l.b16 %v1340
    %v1438 = vunpack.c.l.b16 %v1341
    %v1439 = vunpack.c.l.b16 %v1342
    %v1440 = vunpack.c.l.b16 %v1343
    %v1441 = vunpack.c.l.b16 %v1344
    %v1442 = vunpack.c.l.b16 %v1345
    %v1443 = vunpack.c.l.b16 %v1346
    %v1444 = vunpack.c.l.b16 %v1347
    %v1445 = vunpack.c.l.b16 %v1348
    %v1446 = vunpack.c.l.b16 %v1349
    %v1447 = vunpack.c.l.b16 %v1350
    %v1448 = vunpack.c.l.b16 %v1351
    %v1449 = vunpack.c.l.b16 %v1352
    %v1450 = vunpack.c.l.b16 %v1353
    %v1451 = vunpack.c.l.b16 %v1354
    %v1452 = vunpack.c.l.b16 %v1355
    %v1453 = vunpack.c.l.b16 %v1356
    %v1454 = vunpack.c.l.b16 %v1357
    %v1455 = vunpack.c.l.b16 %v1358
    %v1456 = vunpack.c.l.b16 %v1359
    %v1457 = vunpack.c.l.b16 %v1360
    %v1458 = vunpack.c.l.b16 %v1361
    %v1459 = vunpack.c.l.b16 %v1362
    %v1460 = vunpack.c.l.b16 %v1363
    %v1461 = vunpack.c.l.b16 %v1364
    %v1462 = vunpack.c.l.b16 %v1365
    %v1463 = vunpack.c.l.b16 %v1366
    %v1464 = vunpack.c.l.b16 %v1367
    %v1465 = vunpack.c.l.b16 %v1368
    %v1466 = vunpack.c.l.b16 %v1369
    %v1467 = vunpack.c.l.b16 %v1370
    %v1468 = vunpack.c.l.b16 %v1371
    %v1469 = vunpack.c.l.b16 %v1372
    %v1470 = vunpack.c.l.b16 %v1373
    %v1471 = vunpack.c.l.b16 %v1374
    %v1472 = vunpack.c.l.b16 %v1375
    %v1473 = vunpack.c.l.b16 %v1376
    %v1474 = vunpack.c.l.b16 %v1377
    %v1475 = vunpack.c.l.b16 %v1378
    %v1476 = vunpack.c.l.b16 %v1379
    %v1477 = vunpack.c.l.b16 %v1380
    %v1478 = vunpack.c.l.b16 %v1381
    %v1479 = vunpack.c.l.b16 %v1382
    %v1480 = vpack.c.b16 %v1433, %v1432
    %v1481 = vpack.c.b16 %v1435, %v1434
    %v1482 = vpack.c.b16 %v1437, %v1436
    %v1483 = vpack.c.b16 %v1439, %v1438
    %v1484 = vpack.c.b16 %v1441, %v1440
    %v1485 = vpack.c.b16 %v1443, %v1442
    %v1486 = vpack.c.b16 %v1445, %v1444
    %v1487 = vpack.c.b16 %v1447, %v1446
    %v1488 = vpack.c.b16 %v1449, %v1448
    %v1489 = vpack.c.b16 %v1451, %v1450
    %v1490 = vpack.c.b16 %v1453, %v1452
    %v1491 = vpack.c.b16 %v1455, %v1454
    %v1492 = vpack.c.b16 %v1457, %v1456
    %v1493 = vpack.c.b16 %v1459, %v1458
    %v1494 = vpack.c.b16 %v1461, %v1460
    %v1495 = vpack.c.b16 %v1463, %v1462
    %v1496 = vpack.c.b16 %v1465, %v1464
    %v1497 = vpack.c.b16 %v1467, %v1466
    %v1498 = vpack.c.b16 %v1469, %v1468
    %v1499 = vpack.c.b16 %v1471, %v1470
    %v1500 = vpack.c.b16 %v1473, %v1472
    %v1501 = vpack.c.b16 %v1475, %v1474
    %v1502 = vpack.c.b16 %v1477, %v1476
    %v1503 = vpack.c.b16 %v1479, %v1478
    %1528 = vmatprep.subr.bf16.mxu0 0
    %1529 = vmatpush1.bf16.msra.mxu0 %v1487
    %1530 = vmatprep.subr.bf16.mxu0 0
    %1531 = vmatpush1.bf16.msra.mxu0 %v1486
    %1532 = vmatprep.subr.bf16.mxu0 0
    %1533 = vmatpush1.bf16.msra.mxu0 %v1485
    %1534 = vmatprep.subr.bf16.mxu0 0
    %1535 = vmatpush1.bf16.msra.mxu0 %v1484
    %1536 = vmatprep.subr.bf16.mxu0 0
    %1537 = vmatpush1.bf16.msra.mxu0 %v1483
    %1538 = vmatprep.subr.bf16.mxu0 0
    %1539 = vmatpush1.bf16.msra.mxu0 %v1482
    %1540 = vmatprep.subr.bf16.mxu0 0
    %1541 = vmatpush1.bf16.msra.mxu0 %v1481
    %1542 = vmatprep.subr.bf16.mxu0 0
    %1543 = vmatpush1.bf16.msra.mxu0 %v1480
    %1544 = vmatprep.subr.bf16.mxu0 0
    %1545 = vmatpush2.bf16.msra.mxu0 %v1495
    %1546 = vmatprep.subr.bf16.mxu0 0
    %1547 = vmatpush2.bf16.msra.mxu0 %v1494
    %1548 = vmatprep.subr.bf16.mxu0 0
    %1549 = vmatpush2.bf16.msra.mxu0 %v1493
    %1550 = vmatprep.subr.bf16.mxu0 0
    %1551 = vmatpush2.bf16.msra.mxu0 %v1492
    %1552 = vmatprep.subr.bf16.mxu0 0
    %1553 = vmatpush2.bf16.msra.mxu0 %v1491
    %1554 = vmatprep.subr.bf16.mxu0 0
    %1555 = vmatpush2.bf16.msra.mxu0 %v1490
    %1556 = vmatprep.subr.bf16.mxu0 0
    %1557 = vmatpush2.bf16.msra.mxu0 %v1489
    %1558 = vmatprep.subr.bf16.mxu0 0
    %1559 = vmatpush2.bf16.msra.mxu0 %v1488
    %1560 = vmatprep.mubr.bf16.mxu0 %v1333
    %1561 = vmatmul.mubr.bf16.gmra.mxu0 %v1332
    %v1562 = vpop.f32.mrf.mxu0
    %v1563 = vadd.f32 %v1383, %v1562
    %v1564 = vpop.f32.mrf.mxu0
    %v1565 = vpop.f32.mrf.mxu0
    %v1566 = vadd.f32 %v1383, %v1565
    %v1567 = vpop.f32.mrf.mxu0
    %1568 = vdwg.mxu0
    %1569 = vmatprep.subr.bf16.mxu0 0
    %1570 = vmatpush1.bf16.msra.mxu0 %v1503
    %1571 = vmatprep.subr.bf16.mxu0 0
    %1572 = vmatpush1.bf16.msra.mxu0 %v1502
    %1573 = vmatprep.subr.bf16.mxu0 0
    %1574 = vmatpush1.bf16.msra.mxu0 %v1501
    %1575 = vmatprep.subr.bf16.mxu0 0
    %1576 = vmatpush1.bf16.msra.mxu0 %v1500
    %1577 = vmatprep.subr.bf16.mxu0 0
    %1578 = vmatpush1.bf16.msra.mxu0 %v1499
    %1579 = vmatprep.subr.bf16.mxu0 0
    %1580 = vmatpush1.bf16.msra.mxu0 %v1498
    %1581 = vmatprep.subr.bf16.mxu0 0
    %1582 = vmatpush1.bf16.msra.mxu0 %v1497
    %1583 = vmatprep.subr.bf16.mxu0 0
    %1584 = vmatpush1.bf16.msra.mxu0 %v1496
    %1585 = vmatprep.subr.bf16.mxu0 0
    %1586 = vmatpush2.bf16.msra.mxu0 0
    %1587 = vmatprep.subr.bf16.mxu0 0
    %1588 = vmatpush2.bf16.msra.mxu0 0
    %1589 = vmatprep.subr.bf16.mxu0 0
    %1590 = vmatpush2.bf16.msra.mxu0 0
    %1591 = vmatprep.subr.bf16.mxu0 0
    %1592 = vmatpush2.bf16.msra.mxu0 0
    %1593 = vmatprep.subr.bf16.mxu0 0
    %1594 = vmatpush2.bf16.msra.mxu0 0
    %1595 = vmatprep.subr.bf16.mxu0 0
    %1596 = vmatpush2.bf16.msra.mxu0 0
    %1597 = vmatprep.subr.bf16.mxu0 0
    %1598 = vmatpush2.bf16.msra.mxu0 0
    %1599 = vmatprep.subr.bf16.mxu0 0
    %1600 = vmatpush2.bf16.msra.mxu0 0
    %1601 = vmatprep.mubr.bf16.mxu0 0
    %1602 = vmatmul.mubr.bf16.gmra.mxu0 %v1334
    %v1603 = vpop.f32.mrf.mxu0
    %v1604 = vadd.f32 %v1563, %v1603
    %v1605 = vpop.f32.mrf.mxu0
    %v1606 = vpop.f32.mrf.mxu0
    %v1607 = vadd.f32 %v1566, %v1606
    %v1608 = vpop.f32.mrf.mxu0
    %1609 = vdwg.mxu0
    %v1610 = vmul.f32 %v1604, 0.5
    %v1611 = vmul.f32 %v1607, 0.5
    %v1612 = vtanh.pop %v1610
    %v1613 = vtanh.pop %v1611
    %v1614 = vadd.f32 %v1612, 1.0
    %v1615 = vadd.f32 %v1613, 1.0
    %v1616 = vmul.f32 %v1614, 0.5
    %v1617 = vmul.f32 %v1615, 0.5
    %v1618 = vpack.c.bf16 %v1617, %v1616
    %v1619 = vld [vmem:[#allocation10] sm:$0xf]
    %v1620 = vld [vmem:[#allocation10 + $0x4] sm:$0xf]
    %v1621 = vld [vmem:[#allocation10 + $0x8] sm:$0xf]
    %v1622 = vld [vmem:[#allocation10 + $0xc] sm:$0xf]
    %v1623 = vld [vmem:[#allocation10 + $0x10] sm:$0xf]
    %v1624 = vld [vmem:[#allocation10 + $0x14] sm:$0xf]
    %v1625 = vld [vmem:[#allocation10 + $0x18] sm:$0xf]
    %v1626 = vld [vmem:[#allocation10 + $0x1c] sm:$0xf]
    %v1627 = vld [vmem:[#allocation10 + $0x20] sm:$0xf]
    %v1628 = vld [vmem:[#allocation10 + $0x24] sm:$0xf]
    %v1629 = vld [vmem:[#allocation10 + $0x28] sm:$0xf]
    %v1630 = vld [vmem:[#allocation10 + $0x2c] sm:$0xf]
    %v1631 = vld [vmem:[#allocation10 + $0x30] sm:$0xf]
    %v1632 = vld [vmem:[#allocation10 + $0x34] sm:$0xf]
    %v1633 = vld [vmem:[#allocation10 + $0x38] sm:$0xf]
    %v1634 = vld [vmem:[#allocation10 + $0x3c] sm:$0xf]
    %v1635 = vld [vmem:[#allocation14 + $0x3] ss:$0 sm:$0xff]
    %v1652 = vunpack.c.l.b16 %v1619
    %v1653 = vunpack.c.l.b16 %v1620
    %v1654 = vunpack.c.l.b16 %v1621
    %v1655 = vunpack.c.l.b16 %v1622
    %v1656 = vunpack.c.l.b16 %v1623
    %v1657 = vunpack.c.l.b16 %v1624
    %v1658 = vunpack.c.l.b16 %v1625
    %v1659 = vunpack.c.l.b16 %v1626
    %v1660 = vunpack.c.l.b16 %v1627
    %v1661 = vunpack.c.l.b16 %v1628
    %v1662 = vunpack.c.l.b16 %v1629
    %v1663 = vunpack.c.l.b16 %v1630
    %v1664 = vunpack.c.l.b16 %v1631
    %v1665 = vunpack.c.l.b16 %v1632
    %v1666 = vunpack.c.l.b16 %v1633
    %v1667 = vunpack.c.l.b16 %v1634
    %v1668 = vpack.c.b16 %v1653, %v1652
    %v1669 = vpack.c.b16 %v1655, %v1654
    %v1670 = vpack.c.b16 %v1657, %v1656
    %v1671 = vpack.c.b16 %v1659, %v1658
    %v1672 = vpack.c.b16 %v1661, %v1660
    %v1673 = vpack.c.b16 %v1663, %v1662
    %v1674 = vpack.c.b16 %v1665, %v1664
    %v1675 = vpack.c.b16 %v1667, %v1666
    %1684 = vmatprep.subr.bf16.mxu0 0
    %1685 = vmatpush1.bf16.msra.mxu0 %v1675
    %1686 = vmatprep.subr.bf16.mxu0 0
    %1687 = vmatpush1.bf16.msra.mxu0 %v1674
    %1688 = vmatprep.subr.bf16.mxu0 0
    %1689 = vmatpush1.bf16.msra.mxu0 %v1673
    %1690 = vmatprep.subr.bf16.mxu0 0
    %1691 = vmatpush1.bf16.msra.mxu0 %v1672
    %1692 = vmatprep.subr.bf16.mxu0 0
    %1693 = vmatpush1.bf16.msra.mxu0 %v1671
    %1694 = vmatprep.subr.bf16.mxu0 0
    %1695 = vmatpush1.bf16.msra.mxu0 %v1670
    %1696 = vmatprep.subr.bf16.mxu0 0
    %1697 = vmatpush1.bf16.msra.mxu0 %v1669
    %1698 = vmatprep.subr.bf16.mxu0 0
    %1699 = vmatpush1.bf16.msra.mxu0 %v1668
    %1700 = vmatprep.subr.bf16.mxu0 0
    %1701 = vmatpush2.bf16.msra.mxu0 0
    %1702 = vmatprep.subr.bf16.mxu0 0
    %1703 = vmatpush2.bf16.msra.mxu0 0
    %1704 = vmatprep.subr.bf16.mxu0 0
    %1705 = vmatpush2.bf16.msra.mxu0 0
    %1706 = vmatprep.subr.bf16.mxu0 0
    %1707 = vmatpush2.bf16.msra.mxu0 0
    %1708 = vmatprep.subr.bf16.mxu0 0
    %1709 = vmatpush2.bf16.msra.mxu0 0
    %1710 = vmatprep.subr.bf16.mxu0 0
    %1711 = vmatpush2.bf16.msra.mxu0 0
    %1712 = vmatprep.subr.bf16.mxu0 0
    %1713 = vmatpush2.bf16.msra.mxu0 0
    %1714 = vmatprep.subr.bf16.mxu0 0
    %1715 = vmatpush2.bf16.msra.mxu0 0
    %1716 = vmatprep.mubr.bf16.mxu0 0
    %1717 = vmatmul.mubr.bf16.gmra.mxu0 %v1618
    %v1718 = vpop.f32.mrf.mxu0
    %v1719 = vadd.f32 %v1635, %v1718
    %v1720 = vpop.f32.mrf.mxu0
    %v1721 = vpop.f32.mrf.mxu0
    %v1722 = vadd.f32 %v1635, %v1721
    %v1723 = vpop.f32.mrf.mxu0
    %1724 = vdwg.mxu0
    %v1725 = vmul.f32 %v1719, 0.5
    %v1726 = vmul.f32 %v1722, 0.5
    %v1727 = vtanh.pop %v1725
    %v1728 = vtanh.pop %v1726
    %v1729 = vadd.f32 %v1727, 1.0
    %v1730 = vadd.f32 %v1728, 1.0
    %v1731 = vmul.f32 %v1729, 0.5
    %v1732 = vmul.f32 %v1730, 0.5
    %v1733 = vpack.c.bf16 %v1732, %v1731
    %v1734 = vld [vmem:[#allocation11] sm:$0xf]
    %v1735 = vld [vmem:[#allocation11 + $0x4] sm:$0xf]
    %v1736 = vld [vmem:[#allocation11 + $0x8] sm:$0xf]
    %v1737 = vld [vmem:[#allocation11 + $0xc] sm:$0xf]
    %v1738 = vld [vmem:[#allocation11 + $0x10] sm:$0xf]
    %v1739 = vld [vmem:[#allocation11 + $0x14] sm:$0xf]
    %v1740 = vld [vmem:[#allocation11 + $0x18] sm:$0xf]
    %v1741 = vld [vmem:[#allocation11 + $0x1c] sm:$0xf]
    %v1742 = vld [vmem:[#allocation11 + $0x20] sm:$0xf]
    %v1743 = vld [vmem:[#allocation11 + $0x24] sm:$0xf]
    %v1744 = vld [vmem:[#allocation11 + $0x28] sm:$0xf]
    %v1745 = vld [vmem:[#allocation11 + $0x2c] sm:$0xf]
    %v1746 = vld [vmem:[#allocation11 + $0x30] sm:$0xf]
    %v1747 = vld [vmem:[#allocation11 + $0x34] sm:$0xf]
    %v1748 = vld [vmem:[#allocation11 + $0x38] sm:$0xf]
    %v1749 = vld [vmem:[#allocation11 + $0x3c] sm:$0xf]
    %v1750 = vld [vmem:[#allocation14 + $0x4] ss:$0 sm:$0xff]
    %v1767 = vunpack.c.l.b16 %v1734
    %v1768 = vunpack.c.l.b16 %v1735
    %v1769 = vunpack.c.l.b16 %v1736
    %v1770 = vunpack.c.l.b16 %v1737
    %v1771 = vunpack.c.l.b16 %v1738
    %v1772 = vunpack.c.l.b16 %v1739
    %v1773 = vunpack.c.l.b16 %v1740
    %v1774 = vunpack.c.l.b16 %v1741
    %v1775 = vunpack.c.l.b16 %v1742
    %v1776 = vunpack.c.l.b16 %v1743
    %v1777 = vunpack.c.l.b16 %v1744
    %v1778 = vunpack.c.l.b16 %v1745
    %v1779 = vunpack.c.l.b16 %v1746
    %v1780 = vunpack.c.l.b16 %v1747
    %v1781 = vunpack.c.l.b16 %v1748
    %v1782 = vunpack.c.l.b16 %v1749
    %v1783 = vpack.c.b16 %v1768, %v1767
    %v1784 = vpack.c.b16 %v1770, %v1769
    %v1785 = vpack.c.b16 %v1772, %v1771
    %v1786 = vpack.c.b16 %v1774, %v1773
    %v1787 = vpack.c.b16 %v1776, %v1775
    %v1788 = vpack.c.b16 %v1778, %v1777
    %v1789 = vpack.c.b16 %v1780, %v1779
    %v1790 = vpack.c.b16 %v1782, %v1781
    %1799 = vmatprep.subr.bf16.mxu0 0
    %1800 = vmatpush1.bf16.msra.mxu0 %v1790
    %1801 = vmatprep.subr.bf16.mxu0 0
    %1802 = vmatpush1.bf16.msra.mxu0 %v1789
    %1803 = vmatprep.subr.bf16.mxu0 0
    %1804 = vmatpush1.bf16.msra.mxu0 %v1788
    %1805 = vmatprep.subr.bf16.mxu0 0
    %1806 = vmatpush1.bf16.msra.mxu0 %v1787
    %1807 = vmatprep.subr.bf16.mxu0 0
    %1808 = vmatpush1.bf16.msra.mxu0 %v1786
    %1809 = vmatprep.subr.bf16.mxu0 0
    %1810 = vmatpush1.bf16.msra.mxu0 %v1785
    %1811 = vmatprep.subr.bf16.mxu0 0
    %1812 = vmatpush1.bf16.msra.mxu0 %v1784
    %1813 = vmatprep.subr.bf16.mxu0 0
    %1814 = vmatpush1.bf16.msra.mxu0 %v1783
    %1815 = vmatprep.subr.bf16.mxu0 0
    %1816 = vmatpush2.bf16.msra.mxu0 0
    %1817 = vmatprep.subr.bf16.mxu0 0
    %1818 = vmatpush2.bf16.msra.mxu0 0
    %1819 = vmatprep.subr.bf16.mxu0 0
    %1820 = vmatpush2.bf16.msra.mxu0 0
    %1821 = vmatprep.subr.bf16.mxu0 0
    %1822 = vmatpush2.bf16.msra.mxu0 0
    %1823 = vmatprep.subr.bf16.mxu0 0
    %1824 = vmatpush2.bf16.msra.mxu0 0
    %1825 = vmatprep.subr.bf16.mxu0 0
    %1826 = vmatpush2.bf16.msra.mxu0 0
    %1827 = vmatprep.subr.bf16.mxu0 0
    %1828 = vmatpush2.bf16.msra.mxu0 0
    %1829 = vmatprep.subr.bf16.mxu0 0
    %1830 = vmatpush2.bf16.msra.mxu0 0
    %1831 = vmatprep.mubr.bf16.mxu0 0
    %1832 = vmatmul.mubr.bf16.gmra.mxu0 %v1733
    %v1833 = vpop.f32.mrf.mxu0
    %v1834 = vadd.f32 %v1750, %v1833
    %v1835 = vpop.f32.mrf.mxu0
    %v1836 = vpop.f32.mrf.mxu0
    %v1837 = vadd.f32 %v1750, %v1836
    %v1838 = vpop.f32.mrf.mxu0
    %1839 = vdwg.mxu0
    %v1840 = vmul.f32 %v1834, 0.5
    %v1841 = vmul.f32 %v1837, 0.5
    %v1842 = vtanh.pop %v1840
    %v1843 = vtanh.pop %v1841
    %v1844 = vadd.f32 %v1842, 1.0
    %v1845 = vadd.f32 %v1843, 1.0
    %v1846 = vmul.f32 %v1844, 0.5
    %v1847 = vmul.f32 %v1845, 0.5
    %v1848 = vpack.c.bf16 %v1847, %v1846
    %v1849 = vld [vmem:[#allocation13] sm:$0xf]
    %v1850 = vld [vmem:[#allocation13 + $0x4] sm:$0xf]
    %v1851 = vld [vmem:[#allocation13 + $0x8] sm:$0xf]
    %v1852 = vld [vmem:[#allocation13 + $0xc] sm:$0xf]
    %v1853 = vld [vmem:[#allocation13 + $0x10] sm:$0xf]
    %v1854 = vld [vmem:[#allocation13 + $0x14] sm:$0xf]
    %v1855 = vld [vmem:[#allocation13 + $0x18] sm:$0xf]
    %v1856 = vld [vmem:[#allocation13 + $0x1c] sm:$0xf]
    %v1857 = vld [vmem:[#allocation13 + $0x20] sm:$0xf]
    %v1858 = vld [vmem:[#allocation13 + $0x24] sm:$0xf]
    %v1859 = vld [vmem:[#allocation13 + $0x28] sm:$0xf]
    %v1860 = vld [vmem:[#allocation13 + $0x2c] sm:$0xf]
    %v1861 = vld [vmem:[#allocation13 + $0x30] sm:$0xf]
    %v1862 = vld [vmem:[#allocation13 + $0x34] sm:$0xf]
    %v1863 = vld [vmem:[#allocation13 + $0x38] sm:$0xf]
    %v1864 = vld [vmem:[#allocation13 + $0x3c] sm:$0xf]
    %v1865 = vld [vmem:[#allocation14 + $0x5] ss:$0 sm:$0xff]
    %v1882 = vunpack.c.l.b16 %v1849
    %v1883 = vunpack.c.l.b16 %v1850
    %v1884 = vunpack.c.l.b16 %v1851
    %v1885 = vunpack.c.l.b16 %v1852
    %v1886 = vunpack.c.l.b16 %v1853
    %v1887 = vunpack.c.l.b16 %v1854
    %v1888 = vunpack.c.l.b16 %v1855
    %v1889 = vunpack.c.l.b16 %v1856
    %v1890 = vunpack.c.l.b16 %v1857
    %v1891 = vunpack.c.l.b16 %v1858
    %v1892 = vunpack.c.l.b16 %v1859
    %v1893 = vunpack.c.l.b16 %v1860
    %v1894 = vunpack.c.l.b16 %v1861
    %v1895 = vunpack.c.l.b16 %v1862
    %v1896 = vunpack.c.l.b16 %v1863
    %v1897 = vunpack.c.l.b16 %v1864
    %v1898 = vpack.c.b16 %v1883, %v1882
    %v1899 = vpack.c.b16 %v1885, %v1884
    %v1900 = vpack.c.b16 %v1887, %v1886
    %v1901 = vpack.c.b16 %v1889, %v1888
    %v1902 = vpack.c.b16 %v1891, %v1890
    %v1903 = vpack.c.b16 %v1893, %v1892
    %v1904 = vpack.c.b16 %v1895, %v1894
    %v1905 = vpack.c.b16 %v1897, %v1896
    %1914 = vmatprep.subr.bf16.mxu0 0
    %1915 = vmatpush1.bf16.msra.mxu0 %v1905
    %1916 = vmatprep.subr.bf16.mxu0 0
    %1917 = vmatpush1.bf16.msra.mxu0 %v1904
    %1918 = vmatprep.subr.bf16.mxu0 0
    %1919 = vmatpush1.bf16.msra.mxu0 %v1903
    %1920 = vmatprep.subr.bf16.mxu0 0
    %1921 = vmatpush1.bf16.msra.mxu0 %v1902
    %1922 = vmatprep.subr.bf16.mxu0 0
    %1923 = vmatpush1.bf16.msra.mxu0 %v1901
    %1924 = vmatprep.subr.bf16.mxu0 0
    %1925 = vmatpush1.bf16.msra.mxu0 %v1900
    %1926 = vmatprep.subr.bf16.mxu0 0
    %1927 = vmatpush1.bf16.msra.mxu0 %v1899
    %1928 = vmatprep.subr.bf16.mxu0 0
    %1929 = vmatpush1.bf16.msra.mxu0 %v1898
    %1930 = vmatprep.subr.bf16.mxu0 0
    %1931 = vmatpush2.bf16.msra.mxu0 0
    %1932 = vmatprep.subr.bf16.mxu0 0
    %1933 = vmatpush2.bf16.msra.mxu0 0
    %1934 = vmatprep.subr.bf16.mxu0 0
    %1935 = vmatpush2.bf16.msra.mxu0 0
    %1936 = vmatprep.subr.bf16.mxu0 0
    %1937 = vmatpush2.bf16.msra.mxu0 0
    %1938 = vmatprep.subr.bf16.mxu0 0
    %1939 = vmatpush2.bf16.msra.mxu0 0
    %1940 = vmatprep.subr.bf16.mxu0 0
    %1941 = vmatpush2.bf16.msra.mxu0 0
    %1942 = vmatprep.subr.bf16.mxu0 0
    %1943 = vmatpush2.bf16.msra.mxu0 0
    %1944 = vmatprep.subr.bf16.mxu0 0
    %1945 = vmatpush2.bf16.msra.mxu0 0
    %1946 = vmatprep.mubr.bf16.mxu0 0
    %1947 = vmatmul.mubr.bf16.gmra.mxu0 %v1848
    %v1948 = vpop.f32.mrf.mxu0
    %v1949 = vadd.f32 %v1865, %v1948
    %v1950 = vpop.f32.mrf.mxu0
    %v1951 = vpop.f32.mrf.mxu0
    %v1952 = vadd.f32 %v1865, %v1951
    %v1953 = vpop.f32.mrf.mxu0
    %1954 = vdwg.mxu0
    %v1955 = vmul.f32 %v1949, 0.5
    %v1956 = vmul.f32 %v1952, 0.5
    %v1957 = vtanh.pop %v1955
    %v1958 = vtanh.pop %v1956
    %v1959 = vadd.f32 %v1957, 1.0
    %v1960 = vadd.f32 %v1958, 1.0
    %v1961 = vmul.f32 %v1959, 0.5
    %v1962 = vmul.f32 %v1960, 0.5
    %1963 = vst [vmem:[#allocation16] sm:$0xff] %v1961
    %1964 = vst [vmem:[#allocation16 + $0x8] sm:$0xff] %v1962
    // Predicated region
    $region66: #{tpu_custom_call.1} parent=1 // pred_check
      _
    $region67: #{tpu_custom_call.1} parent=1 // pred_check_branch
      %1966 = sbr.rel (0) target = $region69
    $region68: #{tpu_custom_call.1} parent=1 // pred_region
      %s1968 = ssub.s32 256, 256
      %1969 = vsyncadd [#allocation4], %s1968
      %s1970 = sshll.u32 [#allocation16], 4
      %s1971 = int_to_ptr.vmem [resolvable:$true] %s1970
      %1976 = dma.vmem_to_hbm [thread:$0]  %s1971, 256, %s8, [#allocation4], 128, 128, 8
    $region69: #{tpu_custom_call.1} parent=1 // pred_fallthru
      _
    // Predicated region
    $region70: #{tpu_custom_call.1} parent=1 // pred_check
      _
    $region71: #{tpu_custom_call.1} parent=1 // pred_check_branch
      %1978 = sbr.rel (0) target = $region73
    $region72: #{tpu_custom_call.1} parent=1 // pred_region
      %1979 = dma.done [#allocation4], 256
    $region73: #{tpu_custom_call.1} parent=1 // pred_fallthru
      _
    %1980 = vsyncpa [#allocation3], 1
    %1981 = vsyncpa [#allocation6], 1
    %1982 = vsyncpa [#allocation9], 1
    %1983 = vsyncpa [#allocation12], 1
    %1984 = vsyncpa [#allocation15], 1
    %1985 = vsyncpa [#allocation4], 1

</llo_original>
